<compile_context>
chip_gen: v7x
topology: tpu7x:2x2x1
jax: 0.10.0
libtpu: 0.0.40
codegen_flags: <defaults>
</compile_context>

<pallas_src>
import functools
import math

import jax
import jax.numpy as jnp
from jax import lax
from jax.experimental import pallas as pl
from jax.experimental.pallas import tpu as pltpu

_VMEM_LIMIT = 32 * 1024 * 1024  # safe on v5e/v6e/v7x; headroom on v7x's 64 MiB


# ----------------------------------------------------------------------------
# Fused kernel: per batch element, all heads in one grid step.
#   x tile   : (1, S, H_in) fp32
#   Wqkv     : (H_in, 3H)   bf16   (Wq already pre-scaled by 1/sqrt(D))
#   bqkv     : (1, 3H)      fp32   (bq already pre-scaled by 1/sqrt(D))
#   outputs  : ctx (1, S, H) fp32, probs (1, NH, S, S) fp32
# ----------------------------------------------------------------------------
def _fused_attn_kernel(x_ref, w_ref, b_ref, ctx_ref, probs_ref, *, nh, d):
    H = nh * d

    # Fused QKV projection: one fat (S, H_in) x (H_in, 3H) MXU pass.
    x = x_ref[0].astype(jnp.bfloat16)
    qkv = jnp.dot(x, w_ref[...], preferred_element_type=jnp.float32) + b_ref[...]

    # Q is pre-scaled by 1/sqrt(D) via the folded weights/bias.
    q = qkv[:, :H].astype(jnp.bfloat16)
    k = qkv[:, H:2 * H].astype(jnp.bfloat16)
    v = qkv[:, 2 * H:].astype(jnp.bfloat16)

    ctx_heads = []
    for h in range(nh):                            # static unroll over heads
        lo, hi = h * d, (h + 1) * d
        q_h, k_h, v_h = q[:, lo:hi], k[:, lo:hi], v[:, lo:hi]

        # scores = q_h @ k_h^T, contracting last dims (no k.T materialized)
        s_h = lax.dot_general(
            q_h, k_h, (((1,), (1,)), ((), ())),
            preferred_element_type=jnp.float32,
        )                                          # (S, S) fp32

        # numerically-stable softmax over the last axis (fp32 VPU/EUP math)
        s_h = s_h - jnp.max(s_h, axis=-1, keepdims=True)
        e = jnp.exp(s_h)
        p_h = e * pl.reciprocal(jnp.sum(e, axis=-1, keepdims=True), approx=True)

        probs_ref[0, h] = p_h
        ctx_heads.append(
            jnp.dot(p_h.astype(jnp.bfloat16), v_h,
                    preferred_element_type=jnp.float32)
        )                                          # (S, D) fp32

    # merged, lane-dense context (S, H): single unmasked store, no wrapper
    # transpose needed afterwards.
    ctx_ref[0] = jnp.concatenate(ctx_heads, axis=-1)


# ----------------------------------------------------------------------------
# Module-level wrapper mirroring BertSelfAttention.forward
# (attention_mask=None, head_mask=None, encoder_hidden_states=None,
#  output_attentions=True, dropout in eval mode)
# ----------------------------------------------------------------------------
def bert_self_attention(hidden_states, params, num_attention_heads):
    B, S, H_in = hidden_states.shape
    NH = num_attention_heads
    H = params["wq"].shape[1]                      # all_head_size
    D = H // NH
    scale = 1.0 / math.sqrt(D)

    # One-time parameter prep: fold 1/sqrt(D) into the Q projection, fuse the
    # three weight matrices along the output dim, cast weights to bf16.
    wqkv = jnp.concatenate(
        [params["wq"] * scale, params["wk"], params["wv"]], axis=1
    ).astype(jnp.bfloat16)                                       # (H_in, 3H)
    bqkv = jnp.concatenate(
        [params["bq"] * scale, params["bk"], params["bv"]]
    ).reshape(1, 3 * H).astype(jnp.float32)                      # (1, 3H)

    kernel = functools.partial(_fused_attn_kernel, nh=NH, d=D)

    context_layer, attention_probs = pl.pallas_call(
        kernel,
        out_shape=(
            jax.ShapeDtypeStruct((B, S, H), jnp.float32),
            jax.ShapeDtypeStruct((B, NH, S, S), jnp.float32),
        ),
        grid_spec=pltpu.PrefetchScalarGridSpec(
            num_scalar_prefetch=0,
            grid=(B,),
            in_specs=[
                pl.BlockSpec((1, S, H_in), lambda b: (b, 0, 0)),
                pl.BlockSpec((H_in, 3 * H), lambda b: (0, 0)),   # weight resident
                pl.BlockSpec((1, 3 * H), lambda b: (0, 0)),      # bias resident
            ],
            out_specs=[
                pl.BlockSpec((1, S, H), lambda b: (b, 0, 0)),
                pl.BlockSpec((1, NH, S, S), lambda b: (b, 0, 0, 0)),
            ],
        ),
        compiler_params=pltpu.CompilerParams(
            dimension_semantics=("parallel",),     # shard batch across TCs (v7x)
            vmem_limit_bytes=_VMEM_LIMIT,
        ),
    )(hidden_states, wqkv, bqkv)

    return context_layer, attention_probs          # (B,S,H), (B,NH,S,S)


# ----------------------------------------------------------------------------
# Pure-JAX fp32 reference for verification
# ----------------------------------------------------------------------------
def reference(hidden_states, params, num_attention_heads):
    B, S, H = hidden_states.shape
    NH = num_attention_heads
    D = H // NH
    x = hidden_states.reshape(B * S, H)
    q = (x @ params["wq"] + params["bq"]).reshape(B, S, NH, D).transpose(0, 2, 1, 3)
    k = (x @ params["wk"] + params["bk"]).reshape(B, S, NH, D).transpose(0, 2, 1, 3)
    v = (x @ params["wv"] + params["bv"]).reshape(B, S, NH, D).transpose(0, 2, 1, 3)
    scores = jnp.einsum("bhqd,bhkd->bhqk", q, k) / math.sqrt(D)
    probs = jax.nn.softmax(scores, axis=-1)
    ctx = jnp.einsum("bhqk,bhkd->bhqd", probs, v)
    return ctx.transpose(0, 2, 1, 3).reshape(B, S, H), probs


if __name__ == "__main__":
    # Small shapes consistent with the module: hidden=64, heads=8 (head_dim=8),
    # batch=2, seq=8.
    B, S, H, NH = 2, 8, 64, 8

    key = jax.random.PRNGKey(0)
    k_x, k_wq, k_wk, k_wv, k_bq, k_bk, k_bv = jax.random.split(key, 7)

    hidden_states = jax.random.normal(k_x, (B, S, H), dtype=jnp.float32)

    scale = 1.0 / math.sqrt(H)
    params = {
        # weights stored as (H_in, H_out), i.e. already transposed vs nn.Linear
        "wq": jax.random.normal(k_wq, (H, H), dtype=jnp.float32) * scale,
        "wk": jax.random.normal(k_wk, (H, H), dtype=jnp.float32) * scale,
        "wv": jax.random.normal(k_wv, (H, H), dtype=jnp.float32) * scale,
        "bq": jax.random.normal(k_bq, (H,), dtype=jnp.float32) * 0.01,
        "bk": jax.random.normal(k_bk, (H,), dtype=jnp.float32) * 0.01,
        "bv": jax.random.normal(k_bv, (H,), dtype=jnp.float32) * 0.01,
    }

    ctx, probs = bert_self_attention(hidden_states, params, NH)
    jax.block_until_ready((ctx, probs))

    ctx_ref, probs_ref = reference(hidden_states, params, NH)
    assert ctx.shape == (B, S, H) and probs.shape == (B, NH, S, S)
    # bf16 MXU inputs + approx reciprocal -> loosened tolerances vs fp32 ref
    assert jnp.allclose(ctx, ctx_ref, atol=3e-2, rtol=3e-2)
    assert jnp.allclose(probs, probs_ref, atol=3e-2, rtol=3e-2)

    print("KERNEL_OK")
</pallas_src>

<mosaic_0001>
module attributes {stable_mosaic.version = 11 : i64} {
  func.func @_fused_attn_kernel(%arg0: i32, %arg1: memref<1x8x64xf32, #tpu.memory_space<vmem>>, %arg2: memref<64x192xbf16, #tpu.memory_space<vmem>>, %arg3: memref<1x192xf32, #tpu.memory_space<vmem>>, %arg4: memref<1x8x64xf32, #tpu.memory_space<vmem>>, %arg5: memref<1x8x8x8xf32, #tpu.memory_space<vmem>>) attributes {dimension_semantics = [#tpu.dimension_semantics<parallel>], iteration_bounds = array<i64: 2>, scalar_prefetch = 0 : i64, scratch_operands = 0 : i64, tpu.core_type = #tpu.core_type<tc>, window_params = [{transform_indices = @transform_0, window_bounds = array<i64: 1, 8, 64>}, {pipeline_mode = #tpu.pipeline_mode<synchronous>, transform_indices = @transform_1, window_bounds = array<i64: 64, 192>}, {pipeline_mode = #tpu.pipeline_mode<synchronous>, transform_indices = @transform_2, window_bounds = array<i64: 1, 192>}, {transform_indices = @transform_3, window_bounds = array<i64: 1, 8, 64>}, {transform_indices = @transform_4, window_bounds = array<i64: 1, 8, 8, 8>}]} {
    %c0 = arith.constant 0 : index
    %c0_0 = arith.constant 0 : index
    %c0_1 = arith.constant 0 : index
    %0 = vector.load %arg1[%c0, %c0_0, %c0_1] : memref<1x8x64xf32, #tpu.memory_space<vmem>>, vector<1x8x64xf32>
    %1 = vector.shape_cast %0 : vector<1x8x64xf32> to vector<8x64xf32>
    %2 = arith.truncf %1 : vector<8x64xf32> to vector<8x64xbf16>
    %c0_2 = arith.constant 0 : index
    %c0_3 = arith.constant 0 : index
    %3 = vector.load %arg2[%c0_2, %c0_3] : memref<64x192xbf16, #tpu.memory_space<vmem>>, vector<64x192xbf16>
    %cst = arith.constant dense<0.000000e+00> : vector<8x192xf32>
    %4 = tpu.matmul %2, %3, %cst {dimension_numbers = #tpu.dot_dimension_numbers<[1], [0], [0], [1], [0, 0, 1, 1], [], []>} : vector<8x64xbf16>, vector<64x192xbf16>, vector<8x192xf32> -> vector<8x192xf32>
    %c0_4 = arith.constant 0 : index
    %c0_5 = arith.constant 0 : index
    %5 = vector.load %arg3[%c0_4, %c0_5] : memref<1x192xf32, #tpu.memory_space<vmem>>, vector<1x192xf32>
    %6 = vector.broadcast %5 : vector<1x192xf32> to vector<8x192xf32>
    %7 = arith.addf %4, %6 : vector<8x192xf32>
    %8 = vector.extract_strided_slice %7 {offsets = [0, 0], sizes = [8, 64], strides = [1, 1]} : vector<8x192xf32> to vector<8x64xf32>
    %9 = arith.truncf %8 : vector<8x64xf32> to vector<8x64xbf16>
    %10 = vector.extract_strided_slice %7 {offsets = [0, 64], sizes = [8, 64], strides = [1, 1]} : vector<8x192xf32> to vector<8x64xf32>
    %11 = arith.truncf %10 : vector<8x64xf32> to vector<8x64xbf16>
    %12 = vector.extract_strided_slice %7 {offsets = [0, 128], sizes = [8, 64], strides = [1, 1]} : vector<8x192xf32> to vector<8x64xf32>
    %13 = arith.truncf %12 : vector<8x64xf32> to vector<8x64xbf16>
    %14 = vector.extract_strided_slice %9 {offsets = [0, 0], sizes = [8, 8], strides = [1, 1]} : vector<8x64xbf16> to vector<8x8xbf16>
    %15 = vector.extract_strided_slice %11 {offsets = [0, 0], sizes = [8, 8], strides = [1, 1]} : vector<8x64xbf16> to vector<8x8xbf16>
    %16 = vector.extract_strided_slice %13 {offsets = [0, 0], sizes = [8, 8], strides = [1, 1]} : vector<8x64xbf16> to vector<8x8xbf16>
    %cst_6 = arith.constant dense<0.000000e+00> : vector<8x8xf32>
    %17 = tpu.matmul %14, %15, %cst_6 {dimension_numbers = #tpu.dot_dimension_numbers<[1], [1], [0], [0], [0, 0, 1, 0], [], []>} : vector<8x8xbf16>, vector<8x8xbf16>, vector<8x8xf32> -> vector<8x8xf32>
    %cst_7 = arith.constant dense<0xFF800000> : vector<8xf32>
    %18 = vector.multi_reduction <maximumf>, %17, %cst_7 [1] : vector<8x8xf32> to vector<8xf32>
    %19 = vector.shape_cast %18 : vector<8xf32> to vector<8x1xf32>
    %20 = vector.broadcast %19 : vector<8x1xf32> to vector<8x8xf32>
    %21 = arith.subf %17, %20 : vector<8x8xf32>
    %22 = math.exp %21 : vector<8x8xf32>
    %cst_8 = arith.constant dense<0.000000e+00> : vector<8xf32>
    %23 = vector.multi_reduction <add>, %22, %cst_8 [1] : vector<8x8xf32> to vector<8xf32>
    %24 = vector.shape_cast %23 : vector<8xf32> to vector<8x1xf32>
    %25 = tpu.reciprocal %24 {approx = true} : vector<8x1xf32> -> vector<8x1xf32>
    %26 = vector.broadcast %25 : vector<8x1xf32> to vector<8x8xf32>
    %27 = arith.mulf %22, %26 : vector<8x8xf32>
    %c0_9 = arith.constant 0 : index
    %c0_10 = arith.constant 0 : index
    %c0_11 = arith.constant 0 : index
    %c0_12 = arith.constant 0 : index
    %28 = vector.load %arg5[%c0_9, %c0_10, %c0_11, %c0_12] : memref<1x8x8x8xf32, #tpu.memory_space<vmem>>, vector<1x1x8x8xf32>
    %29 = vector.shape_cast %28 : vector<1x1x8x8xf32> to vector<8x8xf32>
    %30 = vector.shape_cast %27 : vector<8x8xf32> to vector<1x1x8x8xf32>
    tpu.vector_store %arg5[%c0_9, %c0_10, %c0_11, %c0_12], %30 {strides = array<i32>} : memref<1x8x8x8xf32, #tpu.memory_space<vmem>>, vector<1x1x8x8xf32>,
    %31 = arith.truncf %27 : vector<8x8xf32> to vector<8x8xbf16>
    %cst_13 = arith.constant dense<0.000000e+00> : vector<8x8xf32>
    %32 = tpu.matmul %31, %16, %cst_13 {dimension_numbers = #tpu.dot_dimension_numbers<[1], [0], [0], [1], [0, 0, 1, 1], [], []>} : vector<8x8xbf16>, vector<8x8xbf16>, vector<8x8xf32> -> vector<8x8xf32>
    %33 = vector.extract_strided_slice %9 {offsets = [0, 8], sizes = [8, 8], strides = [1, 1]} : vector<8x64xbf16> to vector<8x8xbf16>
    %34 = vector.extract_strided_slice %11 {offsets = [0, 8], sizes = [8, 8], strides = [1, 1]} : vector<8x64xbf16> to vector<8x8xbf16>
    %35 = vector.extract_strided_slice %13 {offsets = [0, 8], sizes = [8, 8], strides = [1, 1]} : vector<8x64xbf16> to vector<8x8xbf16>
    %cst_14 = arith.constant dense<0.000000e+00> : vector<8x8xf32>
    %36 = tpu.matmul %33, %34, %cst_14 {dimension_numbers = #tpu.dot_dimension_numbers<[1], [1], [0], [0], [0, 0, 1, 0], [], []>} : vector<8x8xbf16>, vector<8x8xbf16>, vector<8x8xf32> -> vector<8x8xf32>
    %cst_15 = arith.constant dense<0xFF800000> : vector<8xf32>
    %37 = vector.multi_reduction <maximumf>, %36, %cst_15 [1] : vector<8x8xf32> to vector<8xf32>
    %38 = vector.shape_cast %37 : vector<8xf32> to vector<8x1xf32>
    %39 = vector.broadcast %38 : vector<8x1xf32> to vector<8x8xf32>
    %40 = arith.subf %36, %39 : vector<8x8xf32>
    %41 = math.exp %40 : vector<8x8xf32>
    %cst_16 = arith.constant dense<0.000000e+00> : vector<8xf32>
    %42 = vector.multi_reduction <add>, %41, %cst_16 [1] : vector<8x8xf32> to vector<8xf32>
    %43 = vector.shape_cast %42 : vector<8xf32> to vector<8x1xf32>
    %44 = tpu.reciprocal %43 {approx = true} : vector<8x1xf32> -> vector<8x1xf32>
    %45 = vector.broadcast %44 : vector<8x1xf32> to vector<8x8xf32>
    %46 = arith.mulf %41, %45 : vector<8x8xf32>
    %c0_17 = arith.constant 0 : index
    %c1 = arith.constant 1 : index
    %c0_18 = arith.constant 0 : index
    %c0_19 = arith.constant 0 : index
    %47 = vector.load %arg5[%c0_17, %c1, %c0_18, %c0_19] : memref<1x8x8x8xf32, #tpu.memory_space<vmem>>, vector<1x1x8x8xf32>
    %48 = vector.shape_cast %47 : vector<1x1x8x8xf32> to vector<8x8xf32>
    %49 = vector.shape_cast %46 : vector<8x8xf32> to vector<1x1x8x8xf32>
    tpu.vector_store %arg5[%c0_17, %c1, %c0_18, %c0_19], %49 {strides = array<i32>} : memref<1x8x8x8xf32, #tpu.memory_space<vmem>>, vector<1x1x8x8xf32>,
    %50 = arith.truncf %46 : vector<8x8xf32> to vector<8x8xbf16>
    %cst_20 = arith.constant dense<0.000000e+00> : vector<8x8xf32>
    %51 = tpu.matmul %50, %35, %cst_20 {dimension_numbers = #tpu.dot_dimension_numbers<[1], [0], [0], [1], [0, 0, 1, 1], [], []>} : vector<8x8xbf16>, vector<8x8xbf16>, vector<8x8xf32> -> vector<8x8xf32>
    %52 = vector.extract_strided_slice %9 {offsets = [0, 16], sizes = [8, 8], strides = [1, 1]} : vector<8x64xbf16> to vector<8x8xbf16>
    %53 = vector.extract_strided_slice %11 {offsets = [0, 16], sizes = [8, 8], strides = [1, 1]} : vector<8x64xbf16> to vector<8x8xbf16>
    %54 = vector.extract_strided_slice %13 {offsets = [0, 16], sizes = [8, 8], strides = [1, 1]} : vector<8x64xbf16> to vector<8x8xbf16>
    %cst_21 = arith.constant dense<0.000000e+00> : vector<8x8xf32>
    %55 = tpu.matmul %52, %53, %cst_21 {dimension_numbers = #tpu.dot_dimension_numbers<[1], [1], [0], [0], [0, 0, 1, 0], [], []>} : vector<8x8xbf16>, vector<8x8xbf16>, vector<8x8xf32> -> vector<8x8xf32>
    %cst_22 = arith.constant dense<0xFF800000> : vector<8xf32>
    %56 = vector.multi_reduction <maximumf>, %55, %cst_22 [1] : vector<8x8xf32> to vector<8xf32>
    %57 = vector.shape_cast %56 : vector<8xf32> to vector<8x1xf32>
    %58 = vector.broadcast %57 : vector<8x1xf32> to vector<8x8xf32>
    %59 = arith.subf %55, %58 : vector<8x8xf32>
    %60 = math.exp %59 : vector<8x8xf32>
    %cst_23 = arith.constant dense<0.000000e+00> : vector<8xf32>
    %61 = vector.multi_reduction <add>, %60, %cst_23 [1] : vector<8x8xf32> to vector<8xf32>
    %62 = vector.shape_cast %61 : vector<8xf32> to vector<8x1xf32>
    %63 = tpu.reciprocal %62 {approx = true} : vector<8x1xf32> -> vector<8x1xf32>
    %64 = vector.broadcast %63 : vector<8x1xf32> to vector<8x8xf32>
    %65 = arith.mulf %60, %64 : vector<8x8xf32>
    %c0_24 = arith.constant 0 : index
    %c2 = arith.constant 2 : index
    %c0_25 = arith.constant 0 : index
    %c0_26 = arith.constant 0 : index
    %66 = vector.load %arg5[%c0_24, %c2, %c0_25, %c0_26] : memref<1x8x8x8xf32, #tpu.memory_space<vmem>>, vector<1x1x8x8xf32>
    %67 = vector.shape_cast %66 : vector<1x1x8x8xf32> to vector<8x8xf32>
    %68 = vector.shape_cast %65 : vector<8x8xf32> to vector<1x1x8x8xf32>
    tpu.vector_store %arg5[%c0_24, %c2, %c0_25, %c0_26], %68 {strides = array<i32>} : memref<1x8x8x8xf32, #tpu.memory_space<vmem>>, vector<1x1x8x8xf32>,
    %69 = arith.truncf %65 : vector<8x8xf32> to vector<8x8xbf16>
    %cst_27 = arith.constant dense<0.000000e+00> : vector<8x8xf32>
    %70 = tpu.matmul %69, %54, %cst_27 {dimension_numbers = #tpu.dot_dimension_numbers<[1], [0], [0], [1], [0, 0, 1, 1], [], []>} : vector<8x8xbf16>, vector<8x8xbf16>, vector<8x8xf32> -> vector<8x8xf32>
    %71 = vector.extract_strided_slice %9 {offsets = [0, 24], sizes = [8, 8], strides = [1, 1]} : vector<8x64xbf16> to vector<8x8xbf16>
    %72 = vector.extract_strided_slice %11 {offsets = [0, 24], sizes = [8, 8], strides = [1, 1]} : vector<8x64xbf16> to vector<8x8xbf16>
    %73 = vector.extract_strided_slice %13 {offsets = [0, 24], sizes = [8, 8], strides = [1, 1]} : vector<8x64xbf16> to vector<8x8xbf16>
    %cst_28 = arith.constant dense<0.000000e+00> : vector<8x8xf32>
    %74 = tpu.matmul %71, %72, %cst_28 {dimension_numbers = #tpu.dot_dimension_numbers<[1], [1], [0], [0], [0, 0, 1, 0], [], []>} : vector<8x8xbf16>, vector<8x8xbf16>, vector<8x8xf32> -> vector<8x8xf32>
    %cst_29 = arith.constant dense<0xFF800000> : vector<8xf32>
    %75 = vector.multi_reduction <maximumf>, %74, %cst_29 [1] : vector<8x8xf32> to vector<8xf32>
    %76 = vector.shape_cast %75 : vector<8xf32> to vector<8x1xf32>
    %77 = vector.broadcast %76 : vector<8x1xf32> to vector<8x8xf32>
    %78 = arith.subf %74, %77 : vector<8x8xf32>
    %79 = math.exp %78 : vector<8x8xf32>
    %cst_30 = arith.constant dense<0.000000e+00> : vector<8xf32>
    %80 = vector.multi_reduction <add>, %79, %cst_30 [1] : vector<8x8xf32> to vector<8xf32>
    %81 = vector.shape_cast %80 : vector<8xf32> to vector<8x1xf32>
    %82 = tpu.reciprocal %81 {approx = true} : vector<8x1xf32> -> vector<8x1xf32>
    %83 = vector.broadcast %82 : vector<8x1xf32> to vector<8x8xf32>
    %84 = arith.mulf %79, %83 : vector<8x8xf32>
    %c0_31 = arith.constant 0 : index
    %c3 = arith.constant 3 : index
    %c0_32 = arith.constant 0 : index
    %c0_33 = arith.constant 0 : index
    %85 = vector.load %arg5[%c0_31, %c3, %c0_32, %c0_33] : memref<1x8x8x8xf32, #tpu.memory_space<vmem>>, vector<1x1x8x8xf32>
    %86 = vector.shape_cast %85 : vector<1x1x8x8xf32> to vector<8x8xf32>
    %87 = vector.shape_cast %84 : vector<8x8xf32> to vector<1x1x8x8xf32>
    tpu.vector_store %arg5[%c0_31, %c3, %c0_32, %c0_33], %87 {strides = array<i32>} : memref<1x8x8x8xf32, #tpu.memory_space<vmem>>, vector<1x1x8x8xf32>,
    %88 = arith.truncf %84 : vector<8x8xf32> to vector<8x8xbf16>
    %cst_34 = arith.constant dense<0.000000e+00> : vector<8x8xf32>
    %89 = tpu.matmul %88, %73, %cst_34 {dimension_numbers = #tpu.dot_dimension_numbers<[1], [0], [0], [1], [0, 0, 1, 1], [], []>} : vector<8x8xbf16>, vector<8x8xbf16>, vector<8x8xf32> -> vector<8x8xf32>
    %90 = vector.extract_strided_slice %9 {offsets = [0, 32], sizes = [8, 8], strides = [1, 1]} : vector<8x64xbf16> to vector<8x8xbf16>
    %91 = vector.extract_strided_slice %11 {offsets = [0, 32], sizes = [8, 8], strides = [1, 1]} : vector<8x64xbf16> to vector<8x8xbf16>
    %92 = vector.extract_strided_slice %13 {offsets = [0, 32], sizes = [8, 8], strides = [1, 1]} : vector<8x64xbf16> to vector<8x8xbf16>
    %cst_35 = arith.constant dense<0.000000e+00> : vector<8x8xf32>
    %93 = tpu.matmul %90, %91, %cst_35 {dimension_numbers = #tpu.dot_dimension_numbers<[1], [1], [0], [0], [0, 0, 1, 0], [], []>} : vector<8x8xbf16>, vector<8x8xbf16>, vector<8x8xf32> -> vector<8x8xf32>
    %cst_36 = arith.constant dense<0xFF800000> : vector<8xf32>
    %94 = vector.multi_reduction <maximumf>, %93, %cst_36 [1] : vector<8x8xf32> to vector<8xf32>
    %95 = vector.shape_cast %94 : vector<8xf32> to vector<8x1xf32>
    %96 = vector.broadcast %95 : vector<8x1xf32> to vector<8x8xf32>
    %97 = arith.subf %93, %96 : vector<8x8xf32>
    %98 = math.exp %97 : vector<8x8xf32>
    %cst_37 = arith.constant dense<0.000000e+00> : vector<8xf32>
    %99 = vector.multi_reduction <add>, %98, %cst_37 [1] : vector<8x8xf32> to vector<8xf32>
    %100 = vector.shape_cast %99 : vector<8xf32> to vector<8x1xf32>
    %101 = tpu.reciprocal %100 {approx = true} : vector<8x1xf32> -> vector<8x1xf32>
    %102 = vector.broadcast %101 : vector<8x1xf32> to vector<8x8xf32>
    %103 = arith.mulf %98, %102 : vector<8x8xf32>
    %c0_38 = arith.constant 0 : index
    %c4 = arith.constant 4 : index
    %c0_39 = arith.constant 0 : index
    %c0_40 = arith.constant 0 : index
    %104 = vector.load %arg5[%c0_38, %c4, %c0_39, %c0_40] : memref<1x8x8x8xf32, #tpu.memory_space<vmem>>, vector<1x1x8x8xf32>
    %105 = vector.shape_cast %104 : vector<1x1x8x8xf32> to vector<8x8xf32>
    %106 = vector.shape_cast %103 : vector<8x8xf32> to vector<1x1x8x8xf32>
    tpu.vector_store %arg5[%c0_38, %c4, %c0_39, %c0_40], %106 {strides = array<i32>} : memref<1x8x8x8xf32, #tpu.memory_space<vmem>>, vector<1x1x8x8xf32>,
    %107 = arith.truncf %103 : vector<8x8xf32> to vector<8x8xbf16>
    %cst_41 = arith.constant dense<0.000000e+00> : vector<8x8xf32>
    %108 = tpu.matmul %107, %92, %cst_41 {dimension_numbers = #tpu.dot_dimension_numbers<[1], [0], [0], [1], [0, 0, 1, 1], [], []>} : vector<8x8xbf16>, vector<8x8xbf16>, vector<8x8xf32> -> vector<8x8xf32>
    %109 = vector.extract_strided_slice %9 {offsets = [0, 40], sizes = [8, 8], strides = [1, 1]} : vector<8x64xbf16> to vector<8x8xbf16>
    %110 = vector.extract_strided_slice %11 {offsets = [0, 40], sizes = [8, 8], strides = [1, 1]} : vector<8x64xbf16> to vector<8x8xbf16>
    %111 = vector.extract_strided_slice %13 {offsets = [0, 40], sizes = [8, 8], strides = [1, 1]} : vector<8x64xbf16> to vector<8x8xbf16>
    %cst_42 = arith.constant dense<0.000000e+00> : vector<8x8xf32>
    %112 = tpu.matmul %109, %110, %cst_42 {dimension_numbers = #tpu.dot_dimension_numbers<[1], [1], [0], [0], [0, 0, 1, 0], [], []>} : vector<8x8xbf16>, vector<8x8xbf16>, vector<8x8xf32> -> vector<8x8xf32>
    %cst_43 = arith.constant dense<0xFF800000> : vector<8xf32>
    %113 = vector.multi_reduction <maximumf>, %112, %cst_43 [1] : vector<8x8xf32> to vector<8xf32>
    %114 = vector.shape_cast %113 : vector<8xf32> to vector<8x1xf32>
    %115 = vector.broadcast %114 : vector<8x1xf32> to vector<8x8xf32>
    %116 = arith.subf %112, %115 : vector<8x8xf32>
    %117 = math.exp %116 : vector<8x8xf32>
    %cst_44 = arith.constant dense<0.000000e+00> : vector<8xf32>
    %118 = vector.multi_reduction <add>, %117, %cst_44 [1] : vector<8x8xf32> to vector<8xf32>
    %119 = vector.shape_cast %118 : vector<8xf32> to vector<8x1xf32>
    %120 = tpu.reciprocal %119 {approx = true} : vector<8x1xf32> -> vector<8x1xf32>
    %121 = vector.broadcast %120 : vector<8x1xf32> to vector<8x8xf32>
    %122 = arith.mulf %117, %121 : vector<8x8xf32>
    %c0_45 = arith.constant 0 : index
    %c5 = arith.constant 5 : index
    %c0_46 = arith.constant 0 : index
    %c0_47 = arith.constant 0 : index
    %123 = vector.load %arg5[%c0_45, %c5, %c0_46, %c0_47] : memref<1x8x8x8xf32, #tpu.memory_space<vmem>>, vector<1x1x8x8xf32>
    %124 = vector.shape_cast %123 : vector<1x1x8x8xf32> to vector<8x8xf32>
    %125 = vector.shape_cast %122 : vector<8x8xf32> to vector<1x1x8x8xf32>
    tpu.vector_store %arg5[%c0_45, %c5, %c0_46, %c0_47], %125 {strides = array<i32>} : memref<1x8x8x8xf32, #tpu.memory_space<vmem>>, vector<1x1x8x8xf32>,
    %126 = arith.truncf %122 : vector<8x8xf32> to vector<8x8xbf16>
    %cst_48 = arith.constant dense<0.000000e+00> : vector<8x8xf32>
    %127 = tpu.matmul %126, %111, %cst_48 {dimension_numbers = #tpu.dot_dimension_numbers<[1], [0], [0], [1], [0, 0, 1, 1], [], []>} : vector<8x8xbf16>, vector<8x8xbf16>, vector<8x8xf32> -> vector<8x8xf32>
    %128 = vector.extract_strided_slice %9 {offsets = [0, 48], sizes = [8, 8], strides = [1, 1]} : vector<8x64xbf16> to vector<8x8xbf16>
    %129 = vector.extract_strided_slice %11 {offsets = [0, 48], sizes = [8, 8], strides = [1, 1]} : vector<8x64xbf16> to vector<8x8xbf16>
    %130 = vector.extract_strided_slice %13 {offsets = [0, 48], sizes = [8, 8], strides = [1, 1]} : vector<8x64xbf16> to vector<8x8xbf16>
    %cst_49 = arith.constant dense<0.000000e+00> : vector<8x8xf32>
    %131 = tpu.matmul %128, %129, %cst_49 {dimension_numbers = #tpu.dot_dimension_numbers<[1], [1], [0], [0], [0, 0, 1, 0], [], []>} : vector<8x8xbf16>, vector<8x8xbf16>, vector<8x8xf32> -> vector<8x8xf32>
    %cst_50 = arith.constant dense<0xFF800000> : vector<8xf32>
    %132 = vector.multi_reduction <maximumf>, %131, %cst_50 [1] : vector<8x8xf32> to vector<8xf32>
    %133 = vector.shape_cast %132 : vector<8xf32> to vector<8x1xf32>
    %134 = vector.broadcast %133 : vector<8x1xf32> to vector<8x8xf32>
    %135 = arith.subf %131, %134 : vector<8x8xf32>
    %136 = math.exp %135 : vector<8x8xf32>
    %cst_51 = arith.constant dense<0.000000e+00> : vector<8xf32>
    %137 = vector.multi_reduction <add>, %136, %cst_51 [1] : vector<8x8xf32> to vector<8xf32>
    %138 = vector.shape_cast %137 : vector<8xf32> to vector<8x1xf32>
    %139 = tpu.reciprocal %138 {approx = true} : vector<8x1xf32> -> vector<8x1xf32>
    %140 = vector.broadcast %139 : vector<8x1xf32> to vector<8x8xf32>
    %141 = arith.mulf %136, %140 : vector<8x8xf32>
    %c0_52 = arith.constant 0 : index
    %c6 = arith.constant 6 : index
    %c0_53 = arith.constant 0 : index
    %c0_54 = arith.constant 0 : index
    %142 = vector.load %arg5[%c0_52, %c6, %c0_53, %c0_54] : memref<1x8x8x8xf32, #tpu.memory_space<vmem>>, vector<1x1x8x8xf32>
    %143 = vector.shape_cast %142 : vector<1x1x8x8xf32> to vector<8x8xf32>
    %144 = vector.shape_cast %141 : vector<8x8xf32> to vector<1x1x8x8xf32>
    tpu.vector_store %arg5[%c0_52, %c6, %c0_53, %c0_54], %144 {strides = array<i32>} : memref<1x8x8x8xf32, #tpu.memory_space<vmem>>, vector<1x1x8x8xf32>,
    %145 = arith.truncf %141 : vector<8x8xf32> to vector<8x8xbf16>
    %cst_55 = arith.constant dense<0.000000e+00> : vector<8x8xf32>
    %146 = tpu.matmul %145, %130, %cst_55 {dimension_numbers = #tpu.dot_dimension_numbers<[1], [0], [0], [1], [0, 0, 1, 1], [], []>} : vector<8x8xbf16>, vector<8x8xbf16>, vector<8x8xf32> -> vector<8x8xf32>
    %147 = vector.extract_strided_slice %9 {offsets = [0, 56], sizes = [8, 8], strides = [1, 1]} : vector<8x64xbf16> to vector<8x8xbf16>
    %148 = vector.extract_strided_slice %11 {offsets = [0, 56], sizes = [8, 8], strides = [1, 1]} : vector<8x64xbf16> to vector<8x8xbf16>
    %149 = vector.extract_strided_slice %13 {offsets = [0, 56], sizes = [8, 8], strides = [1, 1]} : vector<8x64xbf16> to vector<8x8xbf16>
    %cst_56 = arith.constant dense<0.000000e+00> : vector<8x8xf32>
    %150 = tpu.matmul %147, %148, %cst_56 {dimension_numbers = #tpu.dot_dimension_numbers<[1], [1], [0], [0], [0, 0, 1, 0], [], []>} : vector<8x8xbf16>, vector<8x8xbf16>, vector<8x8xf32> -> vector<8x8xf32>
    %cst_57 = arith.constant dense<0xFF800000> : vector<8xf32>
    %151 = vector.multi_reduction <maximumf>, %150, %cst_57 [1] : vector<8x8xf32> to vector<8xf32>
    %152 = vector.shape_cast %151 : vector<8xf32> to vector<8x1xf32>
    %153 = vector.broadcast %152 : vector<8x1xf32> to vector<8x8xf32>
    %154 = arith.subf %150, %153 : vector<8x8xf32>
    %155 = math.exp %154 : vector<8x8xf32>
    %cst_58 = arith.constant dense<0.000000e+00> : vector<8xf32>
    %156 = vector.multi_reduction <add>, %155, %cst_58 [1] : vector<8x8xf32> to vector<8xf32>
    %157 = vector.shape_cast %156 : vector<8xf32> to vector<8x1xf32>
    %158 = tpu.reciprocal %157 {approx = true} : vector<8x1xf32> -> vector<8x1xf32>
    %159 = vector.broadcast %158 : vector<8x1xf32> to vector<8x8xf32>
    %160 = arith.mulf %155, %159 : vector<8x8xf32>
    %c0_59 = arith.constant 0 : index
    %c7 = arith.constant 7 : index
    %c0_60 = arith.constant 0 : index
    %c0_61 = arith.constant 0 : index
    %161 = vector.load %arg5[%c0_59, %c7, %c0_60, %c0_61] : memref<1x8x8x8xf32, #tpu.memory_space<vmem>>, vector<1x1x8x8xf32>
    %162 = vector.shape_cast %161 : vector<1x1x8x8xf32> to vector<8x8xf32>
    %163 = vector.shape_cast %160 : vector<8x8xf32> to vector<1x1x8x8xf32>
    tpu.vector_store %arg5[%c0_59, %c7, %c0_60, %c0_61], %163 {strides = array<i32>} : memref<1x8x8x8xf32, #tpu.memory_space<vmem>>, vector<1x1x8x8xf32>,
    %164 = arith.truncf %160 : vector<8x8xf32> to vector<8x8xbf16>
    %cst_62 = arith.constant dense<0.000000e+00> : vector<8x8xf32>
    %165 = tpu.matmul %164, %149, %cst_62 {dimension_numbers = #tpu.dot_dimension_numbers<[1], [0], [0], [1], [0, 0, 1, 1], [], []>} : vector<8x8xbf16>, vector<8x8xbf16>, vector<8x8xf32> -> vector<8x8xf32>
    %166 = tpu.concatenate %32, %51, %70, %89, %108, %127, %146, %165 in 1 : vector<8x8xf32>, vector<8x8xf32>, vector<8x8xf32>, vector<8x8xf32>, vector<8x8xf32>, vector<8x8xf32>, vector<8x8xf32>, vector<8x8xf32> -> vector<8x64xf32>
    %c0_63 = arith.constant 0 : index
    %c0_64 = arith.constant 0 : index
    %c0_65 = arith.constant 0 : index
    %167 = vector.load %arg4[%c0_63, %c0_64, %c0_65] : memref<1x8x64xf32, #tpu.memory_space<vmem>>, vector<1x8x64xf32>
    %168 = vector.shape_cast %167 : vector<1x8x64xf32> to vector<8x64xf32>
    %169 = vector.shape_cast %166 : vector<8x64xf32> to vector<1x8x64xf32>
    tpu.vector_store %arg4[%c0_63, %c0_64, %c0_65], %169 {strides = array<i32>} : memref<1x8x64xf32, #tpu.memory_space<vmem>>, vector<1x8x64xf32>,
    return
  }
  func.func @transform_0(%arg0: i32) -> (i32, i32, i32) {
    %c0_i32 = arith.constant 0 : i32
    %c0_i32_0 = arith.constant 0 : i32
    %c0_i32_1 = arith.constant 0 : i32
    return %arg0, %c0_i32, %c0_i32_0 : i32, i32, i32
  }
  func.func @transform_1(%arg0: i32) -> (i32, i32) {
    %c0_i32 = arith.constant 0 : i32
    %c0_i32_0 = arith.constant 0 : i32
    %c0_i32_1 = arith.constant 0 : i32
    return %c0_i32, %c0_i32_0 : i32, i32
  }
  func.func @transform_2(%arg0: i32) -> (i32, i32) {
    %c0_i32 = arith.constant 0 : i32
    %c0_i32_0 = arith.constant 0 : i32
    %c0_i32_1 = arith.constant 0 : i32
    return %c0_i32, %c0_i32_0 : i32, i32
  }
  func.func @transform_3(%arg0: i32) -> (i32, i32, i32) {
    %c0_i32 = arith.constant 0 : i32
    %c0_i32_0 = arith.constant 0 : i32
    %c0_i32_1 = arith.constant 0 : i32
    return %arg0, %c0_i32, %c0_i32_0 : i32, i32, i32
  }
  func.func @transform_4(%arg0: i32) -> (i32, i32, i32, i32) {
    %c0_i32 = arith.constant 0 : i32
    %c0_i32_0 = arith.constant 0 : i32
    %c0_i32_1 = arith.constant 0 : i32
    %c0_i32_2 = arith.constant 0 : i32
    return %arg0, %c0_i32, %c0_i32_0, %c0_i32_1 : i32, i32, i32, i32
  }
}

</mosaic_0001>

<llo_original>
// kernel: tpu_custom_call.1
$region0: #{tpu_custom_call.1}
  #allocation0 [shape = 'u32[]', space=smem, size = 0x4, offset = 0x4, fixed_abs, tag = 'smem constant byte address 0x4 - core index']
  #allocation1 [shape = 'u32[144,128]{1,0:T(1,128)}', space=vmem, size = 0x12000, scoped, tag = 'internal scratch']
  %s0 = inlined_call_operand.hbm [shape: f32[2,8,64], index: 0, kind: input, shape index: {}]
  %s1 = inlined_call_operand.hbm [shape: bf16[64,192], index: 1, kind: input, shape index: {}]
  %s2 = inlined_call_operand.vmem [shape: f32[1,192], index: 2, kind: input, shape index: {}]
  %s3 = inlined_call_operand.hbm [shape: f32[2,8,64], index: 3, kind: output, shape index: {0}]
  %s4 = inlined_call_operand.hbm [shape: f32[2,8,8,8], index: 4, kind: output, shape index: {1}]
  %5 = xla_tuple %s3, %s4
  %s6 = sld [smem:[#allocation0]]
  $region61: #{tpu_custom_call.1} parent=0
    _
  %s8 = ssub.s32 1, %s6
  %s9 = scalar_select 0, %s8, %s6
  $region1: #{tpu_custom_call.1} parent=0
    #allocation2 [shape = 'u8[8192]{0}', space=vmem, size = 0x2000, scoped, tag = 'input window, operand 0']
    #allocation3 [shape = 's32[2]{0}', space=sflag, size = 0x8, scoped, tag = 'scoped memory for tpu_custom_call.1']
    #allocation4 [shape = 's32[2]{0}', space=sflag, size = 0x8, scoped, tag = 'scoped memory for tpu_custom_call.1']
    #allocation5 [shape = 'u8[32768]{0}', space=vmem, size = 0x8000, scoped, tag = 'input window, operand 1, single buffered']
    #allocation6 [shape = 's32[1]{0}', space=sflag, size = 0x4, scoped, tag = 'scoped memory for tpu_custom_call.1']
    #allocation7 [shape = 'u8[8192]{0}', space=vmem, size = 0x2000, scoped, tag = 'output window, operand 0']
    #allocation8 [shape = 'u8[65536]{0}', space=vmem, size = 0x10000, scoped, tag = 'output window, operand 1']
    #allocation9 [shape = 's32[2]{0}', space=sflag, size = 0x8, scoped, tag = 'scoped memory for tpu_custom_call.1']
    %10 = vsyncpa [#allocation3], 0
    %s11 = scalar_lea.sflag [#allocation3], 1
    %12 = vsyncpa %s11, 0
    %13 = vsyncpa [#allocation6], 0
    %14 = vsyncpa [#allocation4], 0
    %s15 = scalar_lea.sflag [#allocation4], 1
    %16 = vsyncpa %s15, 0
    %17 = vsyncpa [#allocation9], 0
    %s18 = scalar_lea.sflag [#allocation9], 1
    %19 = vsyncpa %s18, 0
    loop: start=0, step=1, limit=4
    $region2: #{tpu_custom_call.1} parent=1 // loop_pre_header
      _
    $region3: #{tpu_custom_call.1} parent=1 // loop_header
      %s21 = sphi 0, %s25
      %p22 = scmp.ge.s32.totalorder %s21, 4
      %s31 = sphi 0, %s33
      %s34 = sphi 0, %s31
      %s35 = sphi 0, %s34
      %s51 = sphi 0, %s35
      %s55 = sphi 0, %s55
      %s57 = sphi 0, %s55
      %s58 = sphi 0, %s57
      %s72 = sphi 0, %s58
      %s76 = sphi 0, %s76
      %s78 = sphi 0, %s76
      %s79 = sphi 0, %s78
      %s93 = sphi 0, %s79
      %s99 = sphi 0, %s101
      %s102 = sphi 0, %s99
      %s103 = sphi 0, %s102
      %s119 = sphi 0, %s103
      %s125 = sphi 0, %s127
      %s128 = sphi 0, %s125
      %s129 = sphi 0, %s128
      %s145 = sphi 0, %s129
    $region4: #{tpu_custom_call.1} parent=1 // loop_header_branch
      %24 = sbr.rel (%p22) target = $region8
    $region5: #{tpu_custom_call.1} parent=1 // loop_body
      %s26 = ssub.s32 %s21, 1
      %s27 = ssub.s32 %s21, 2
      %s28 = sadd.s32 %s21, 1
      %s29 = ssub.s32 %s21, %s28
      %p30 = scmp.eq.s32.totalorder %s29, 0
      %s32 = sadd.s32 %s31, 1
      %s33 = scalar_select %p30, %s31, %s32
      %p36 = pneg %p30
      %p37 = scmp.eq.s32.totalorder %s21, 1
      %p38 = por %p36, %p37
      %p39 = scmp.ne.s32.totalorder %s31, %s34
      %p40 = scmp.eq.s32.totalorder %s21, 0
      %p41 = por %p39, %p40
      %p42 = scmp.ne.s32.totalorder %s31, %s34
      %p43 = scmp.eq.s32.totalorder %s26, 1
      %p44 = por %p42, %p43
      %p45 = scmp.ne.s32.totalorder %s34, %s35
      %p46 = scmp.eq.s32.totalorder %s26, 0
      %p47 = por %p45, %p46
      %p48 = scmp.ne.s32.totalorder %s34, %s35
      %p49 = scmp.eq.s32.totalorder %s27, 1
      %p50 = por %p48, %p49
      %p52 = scmp.ne.s32.totalorder %s35, %s51
      %p53 = scmp.eq.s32.totalorder %s27, 0
      %p54 = por %p52, %p53
      %s56 = sadd.s32 %s55, 1
      %p59 = scmp.eq.s32.totalorder %s21, 1
      %p60 = scmp.ne.s32.totalorder %s55, %s57
      %p61 = scmp.eq.s32.totalorder %s21, 0
      %p62 = por %p60, %p61
      %p63 = scmp.ne.s32.totalorder %s55, %s57
      %p64 = scmp.eq.s32.totalorder %s26, 1
      %p65 = por %p63, %p64
      %p66 = scmp.ne.s32.totalorder %s57, %s58
      %p67 = scmp.eq.s32.totalorder %s26, 0
      %p68 = por %p66, %p67
      %p69 = scmp.ne.s32.totalorder %s57, %s58
      %p70 = scmp.eq.s32.totalorder %s27, 1
      %p71 = por %p69, %p70
      %p73 = scmp.ne.s32.totalorder %s58, %s72
      %p74 = scmp.eq.s32.totalorder %s27, 0
      %p75 = por %p73, %p74
      %s77 = sadd.s32 %s76, 1
      %p80 = scmp.eq.s32.totalorder %s21, 1
      %p81 = scmp.ne.s32.totalorder %s76, %s78
      %p82 = scmp.eq.s32.totalorder %s21, 0
      %p83 = por %p81, %p82
      %p84 = scmp.ne.s32.totalorder %s76, %s78
      %p85 = scmp.eq.s32.totalorder %s26, 1
      %p86 = por %p84, %p85
      %p87 = scmp.ne.s32.totalorder %s78, %s79
      %p88 = scmp.eq.s32.totalorder %s26, 0
      %p89 = por %p87, %p88
      %p90 = scmp.ne.s32.totalorder %s78, %s79
      %p91 = scmp.eq.s32.totalorder %s27, 1
      %p92 = por %p90, %p91
      %p94 = scmp.ne.s32.totalorder %s79, %s93
      %p95 = scmp.eq.s32.totalorder %s27, 0
      %p96 = por %p94, %p95
      %s97 = ssub.s32 %s21, %s28
      %p98 = scmp.eq.s32.totalorder %s97, 0
      %s100 = sadd.s32 %s99, 1
      %s101 = scalar_select %p98, %s99, %s100
      %p104 = pneg %p98
      %p105 = scmp.eq.s32.totalorder %s21, 1
      %p106 = por %p104, %p105
      %p107 = scmp.ne.s32.totalorder %s99, %s102
      %p108 = scmp.eq.s32.totalorder %s21, 0
      %p109 = por %p107, %p108
      %p110 = scmp.ne.s32.totalorder %s99, %s102
      %p111 = scmp.eq.s32.totalorder %s26, 1
      %p112 = por %p110, %p111
      %p113 = scmp.ne.s32.totalorder %s102, %s103
      %p114 = scmp.eq.s32.totalorder %s26, 0
      %p115 = por %p113, %p114
      %p116 = scmp.ne.s32.totalorder %s102, %s103
      %p117 = scmp.eq.s32.totalorder %s27, 1
      %p118 = por %p116, %p117
      %p120 = scmp.ne.s32.totalorder %s103, %s119
      %p121 = scmp.eq.s32.totalorder %s27, 0
      %p122 = por %p120, %p121
      %s123 = ssub.s32 %s21, %s28
      %p124 = scmp.eq.s32.totalorder %s123, 0
      %s126 = sadd.s32 %s125, 1
      %s127 = scalar_select %p124, %s125, %s126
      %p130 = pneg %p124
      %p131 = scmp.eq.s32.totalorder %s21, 1
      %p132 = por %p130, %p131
      %p133 = scmp.ne.s32.totalorder %s125, %s128
      %p134 = scmp.eq.s32.totalorder %s21, 0
      %p135 = por %p133, %p134
      %p136 = scmp.ne.s32.totalorder %s125, %s128
      %p137 = scmp.eq.s32.totalorder %s26, 1
      %p138 = por %p136, %p137
      %p139 = scmp.ne.s32.totalorder %s128, %s129
      %p140 = scmp.eq.s32.totalorder %s26, 0
      %p141 = por %p139, %p140
      %p142 = scmp.ne.s32.totalorder %s128, %s129
      %p143 = scmp.eq.s32.totalorder %s27, 1
      %p144 = por %p142, %p143
      %p146 = scmp.ne.s32.totalorder %s129, %s145
      %p147 = scmp.eq.s32.totalorder %s27, 0
      %p148 = por %p146, %p147
      %p149 = scmp.le.s32.totalorder 1, %s21
      %p150 = scmp.lt.s32.totalorder %s21, 3
      %p151 = pnand %p149, %p150
      %p152 = pneg %p151
      // Predicated region
      $region9: #{tpu_custom_call.1} parent=5 // pred_check
        _
      $region10: #{tpu_custom_call.1} parent=5 // pred_check_branch
        %154 = sbr.rel (%p151) target = $region12
      $region11: #{tpu_custom_call.1} parent=5 // pred_region
        %s155 = ssub.s32 %s21, 1
        // Predicated region
        $region13: #{tpu_custom_call.1} parent=11 // pred_check
          %p156 = pneg %p68
        $region14: #{tpu_custom_call.1} parent=11 // pred_check_branch
          %158 = sbr.rel (%p156) target = $region16
        $region15: #{tpu_custom_call.1} parent=11 // pred_region
          %s160 = ssub.s32 1024, 1024
          %161 = vsyncadd [#allocation6], %s160
          %s162 = sshll.u32 [#allocation5], 4
          %s163 = int_to_ptr.vmem [resolvable:$true] %s162
          %168 = dma.hbm_to_vmem [thread:$0]  %s1, 1024, %s163, [#allocation6], 128, 128, 8
        $region16: #{tpu_custom_call.1} parent=11 // pred_fallthru
          _
        // Predicated region
        $region17: #{tpu_custom_call.1} parent=11 // pred_check
          %p169 = pneg %p89
        $region18: #{tpu_custom_call.1} parent=11 // pred_check_branch
          %171 = sbr.rel (%p169) target = $region20
        $region19: #{tpu_custom_call.1} parent=11 // pred_region
          _
        $region20: #{tpu_custom_call.1} parent=11 // pred_fallthru
          _
      $region12: #{tpu_custom_call.1} parent=5 // pred_fallthru
        _
      %p172 = scmp.lt.s32.totalorder %s21, 2
      // Predicated region
      $region21: #{tpu_custom_call.1} parent=5 // pred_check
        %p173 = pneg %p172
      $region22: #{tpu_custom_call.1} parent=5 // pred_check_branch
        %175 = sbr.rel (%p173) target = $region24
      $region23: #{tpu_custom_call.1} parent=5 // pred_region
        // Predicated region
        $region25: #{tpu_custom_call.1} parent=23 // pred_check
          %p176 = pneg %p41
        $region26: #{tpu_custom_call.1} parent=23 // pred_check_branch
          %178 = sbr.rel (%p176) target = $region28
        $region27: #{tpu_custom_call.1} parent=23 // pred_region
          %s179 = sand.u32 %s31, 1
          %s180 = scalar_lea.sflag [#allocation3], %s179
          %s181 = sand.u32 %s31, 1
          %s182 = smul.addr %s181, 8
          %s183 = scalar_lea.vmem [#allocation2], %s182
          %s185 = ssub.s32 128, 128
          %186 = vsyncadd %s180, %s185
          %s187 = smul.addr %s21, 128
          %s188 = scalar_lea.hbm %s0, %s187
          %s190 = sshll.u32 %s183, 4
          %s191 = int_to_ptr.vmem [resolvable:$true] %s190
          %193 = dma.hbm_to_vmem [thread:$0]  %s188, 128, %s191, %s180
        $region28: #{tpu_custom_call.1} parent=23 // pred_fallthru
          _
      $region24: #{tpu_custom_call.1} parent=5 // pred_fallthru
        _
      %p194 = scmp.le.s32.totalorder 1, %s21
      %p195 = scmp.lt.s32.totalorder %s21, 3
      %p196 = pnand %p194, %p195
      %p197 = pneg %p196
      // Predicated region
      $region29: #{tpu_custom_call.1} parent=5 // pred_check
        _
      $region30: #{tpu_custom_call.1} parent=5 // pred_check_branch
        %199 = sbr.rel (%p196) target = $region32
      $region31: #{tpu_custom_call.1} parent=5 // pred_region
        %s200 = ssub.s32 %s21, 1
        %s201 = sand.u32 %s34, 1
        %s202 = scalar_lea.sflag [#allocation3], %s201
        %s203 = sand.u32 %s34, 1
        %s204 = smul.addr %s203, 8
        %s205 = scalar_lea.vmem [#allocation2], %s204
        // Predicated region
        $region33: #{tpu_custom_call.1} parent=31 // pred_check
          %p206 = pneg %p47
        $region34: #{tpu_custom_call.1} parent=31 // pred_check_branch
          %208 = sbr.rel (%p206) target = $region36
        $region35: #{tpu_custom_call.1} parent=31 // pred_region
          %209 = dma.done %s202, 128
        $region36: #{tpu_custom_call.1} parent=31 // pred_fallthru
          _
        // Predicated region
        $region37: #{tpu_custom_call.1} parent=31 // pred_check
          %p210 = pneg %p68
        $region38: #{tpu_custom_call.1} parent=31 // pred_check_branch
          %212 = sbr.rel (%p210) target = $region40
        $region39: #{tpu_custom_call.1} parent=31 // pred_region
          %213 = dma.done [#allocation6], 1024
        $region40: #{tpu_custom_call.1} parent=31 // pred_fallthru
          _
        %s214 = sand.u32 %s34, 1
        %s215 = scalar_lea.sflag [#allocation3], %s214
        %s216 = sand.u32 %s34, 1
        %s217 = smul.addr %s216, 8
        %s218 = scalar_lea.vmem [#allocation2], %s217
        %p219 = pneg %p47
        %p220 = pneg %p44
        %p221 = pneg %p68
        %p222 = pneg %p65
        %p223 = pneg %p89
        %p224 = pneg %p86
        %p225 = pneg %p115
        %p226 = pneg %p112
        %s227 = sand.u32 %s102, 1
        %s228 = scalar_lea.sflag [#allocation4], %s227
        %s229 = sand.u32 %s102, 1
        %s230 = smul.addr %s229, 8
        %s231 = scalar_lea.vmem [#allocation7], %s230
        %p232 = pneg %p141
        %p233 = pneg %p138
        %s234 = sand.u32 %s128, 1
        %s235 = scalar_lea.sflag [#allocation9], %s234
        %s236 = sand.u32 %s128, 1
        %s237 = smul.addr %s236, 64
        %s238 = scalar_lea.vmem [#allocation8], %s237
        %v240 = vld [vmem:[%s205] sm:$0xff]
        %v241 = vpack.c.bf16 %v240, %v240
        %v242 = vld [vmem:[#allocation5] sm:$0xff]
        %v243 = vld [vmem:[#allocation5 + $0x8] sm:$0xff]
        %v244 = vld [vmem:[#allocation5 + $0x10] sm:$0xff]
        %v245 = vld [vmem:[#allocation5 + $0x18] sm:$0xff]
        %v246 = vld [vmem:[#allocation5 + $0x20] sm:$0xff]
        %v247 = vld [vmem:[#allocation5 + $0x28] sm:$0xff]
        %v248 = vld [vmem:[#allocation5 + $0x30] sm:$0xff]
        %v249 = vld [vmem:[#allocation5 + $0x38] sm:$0xff]
        %v250 = vld [vmem:[%s2] sm:$0x3]
        %v252 = vlaneseq
        %v253 = vshrl.u32 %v252, 7
        %v254 = vsub.s32 0, %v253
        %v255 = vrot.slane %v250, %v254
        %v256 = vlaneseq
        %v257 = vshrl.u32 %v256, 7
        %v258 = vsub.s32 1, %v257
        %v259 = vrot.slane %v250, %v258
        %v270 = vunpack.c.l.b16 %v242
        %v271 = vunpack.c.h.b16 %v242
        %v272 = vunpack.c.l.b16 %v243
        %v273 = vunpack.c.h.b16 %v243
        %v274 = vunpack.c.l.b16 %v244
        %v275 = vunpack.c.h.b16 %v244
        %v276 = vunpack.c.l.b16 %v245
        %v277 = vunpack.c.h.b16 %v245
        %v278 = vunpack.c.l.b16 %v246
        %v279 = vunpack.c.h.b16 %v246
        %v280 = vunpack.c.l.b16 %v247
        %v281 = vunpack.c.h.b16 %v247
        %v282 = vunpack.c.l.b16 %v248
        %v283 = vunpack.c.h.b16 %v248
        %v284 = vunpack.c.l.b16 %v249
        %v285 = vunpack.c.h.b16 %v249
        %v286 = vpack.c.b16 %v272, %v270
        %v287 = vpack.c.b16 %v273, %v271
        %v288 = vpack.c.b16 %v276, %v274
        %v289 = vpack.c.b16 %v277, %v275
        %v290 = vpack.c.b16 %v280, %v278
        %v291 = vpack.c.b16 %v281, %v279
        %v292 = vpack.c.b16 %v284, %v282
        %v293 = vpack.c.b16 %v285, %v283
        %vm302 = vcmask 523264
        %v304 = vsel %vm302, %v241, 0
        %306 = vmatprep.subr.bf16.mxu0 %v287
        %307 = vmatpush1.bf16.msra.mxu0 %v286
        %308 = vmatprep.subr.bf16.mxu0 %v289
        %309 = vmatpush1.bf16.msra.mxu0 %v288
        %310 = vmatprep.subr.bf16.mxu0 %v291
        %311 = vmatpush1.bf16.msra.mxu0 %v290
        %312 = vmatprep.subr.bf16.mxu0 %v293
        %313 = vmatpush1.bf16.msra.mxu0 %v292
        %314 = vmatprep.subr.bf16.mxu0 0
        %315 = vmatpush1.bf16.msra.mxu0 0
        %316 = vmatprep.subr.bf16.mxu0 0
        %317 = vmatpush1.bf16.msra.mxu0 0
        %318 = vmatprep.subr.bf16.mxu0 0
        %319 = vmatpush1.bf16.msra.mxu0 0
        %320 = vmatprep.subr.bf16.mxu0 0
        %321 = vmatpush1.bf16.msra.mxu0 0
        %322 = vmatprep.subr.bf16.mxu0 0
        %323 = vmatpush1.bf16.msra.mxu0 0
        %324 = vmatprep.subr.bf16.mxu0 0
        %325 = vmatpush1.bf16.msra.mxu0 0
        %326 = vmatprep.subr.bf16.mxu0 0
        %327 = vmatpush1.bf16.msra.mxu0 0
        %328 = vmatprep.subr.bf16.mxu0 0
        %329 = vmatpush1.bf16.msra.mxu0 0
        %330 = vmatprep.subr.bf16.mxu0 0
        %331 = vmatpush1.bf16.msra.mxu0 0
        %332 = vmatprep.subr.bf16.mxu0 0
        %333 = vmatpush1.bf16.msra.mxu0 0
        %334 = vmatprep.subr.bf16.mxu0 0
        %335 = vmatpush1.bf16.msra.mxu0 0
        %336 = vmatprep.subr.bf16.mxu0 0
        %337 = vmatpush1.bf16.msra.mxu0 0
        %338 = vmatprep.mubr.bf16.mxu0 0
        %339 = vmatmul.mubr.bf16.gmra.mrb[0].mxu0 %v304
        %v340 = vpop.f32.mrb[0].mxu0
        %v341 = vadd.f32 %v255, %v340
        %v342 = vpop.f32.mrb[0].mxu0
        %v343 = vadd.f32 %v259, %v342
        %v344 = vpop.f32.mrb[0].mxu0
        %v345 = vpop.f32.mrb[0].mxu0
        %346 = vdwg.mxu0
        %v347 = vpack.c.bf16 %v341, %v341
        %v348 = vpack.c.bf16 %v343, %v343
        %350 = vrot.lane.b32.xlu0 %v347, 64
        %v351 = vpop.permute.xlu0 %350
        %vm352 = vcmask 64512
        %v354 = vsel %vm352, %v347, 0
        %v357 = vsel %vm352, %v351, 0
        %359 = vmatprep.subr.bf16.mxu0 0
        %360 = vmatpush1.bf16.xpose.msra.mxu0 %v357
        %361 = vmatprep.subr.bf16.mxu0 0
        %362 = vmatpush1.bf16.xpose.msra.mxu0 0
        %363 = vmatprep.subr.bf16.mxu0 0
        %364 = vmatpush1.bf16.xpose.msra.mxu0 0
        %365 = vmatprep.subr.bf16.mxu0 0
        %366 = vmatpush1.bf16.xpose.msra.mxu0 0
        %367 = vmatprep.subr.bf16.mxu0 0
        %368 = vmatpush1.bf16.xpose.msra.mxu0 0
        %369 = vmatprep.subr.bf16.mxu0 0
        %370 = vmatpush1.bf16.xpose.msra.mxu0 0
        %371 = vmatprep.subr.bf16.mxu0 0
        %372 = vmatpush1.bf16.xpose.msra.mxu0 0
        %373 = vmatprep.subr.bf16.mxu0 0
        %374 = vmatpush1.bf16.xpose.msra.mxu0 0
        %375 = vmatprep.subr.bf16.mxu0 0
        %376 = vmatpush1.bf16.xpose.msra.mxu0 0
        %377 = vmatprep.subr.bf16.mxu0 0
        %378 = vmatpush1.bf16.xpose.msra.mxu0 0
        %379 = vmatprep.subr.bf16.mxu0 0
        %380 = vmatpush1.bf16.xpose.msra.mxu0 0
        %381 = vmatprep.subr.bf16.mxu0 0
        %382 = vmatpush1.bf16.xpose.msra.mxu0 0
        %383 = vmatprep.subr.bf16.mxu0 0
        %384 = vmatpush1.bf16.xpose.msra.mxu0 0
        %385 = vmatprep.subr.bf16.mxu0 0
        %386 = vmatpush1.bf16.xpose.msra.mxu0 0
        %387 = vmatprep.subr.bf16.mxu0 0
        %388 = vmatpush1.bf16.xpose.msra.mxu0 0
        %389 = vmatprep.subr.bf16.mxu0 0
        %390 = vmatpush1.bf16.xpose.msra.mxu0 0
        %391 = vmatprep.mubr.bf16.mxu0 0
        %392 = vmatmul.mubr.bf16.gmra.mrb[0].mxu0 %v354
        %v393 = vpop.f32.mrb[0].mxu0
        %v394 = vadd.f32 0.0, %v393
        %v395 = vpop.f32.mrb[0].mxu0
        %v396 = vpop.f32.mrb[0].mxu0
        %v397 = vpop.f32.mrb[0].mxu0
        %398 = vdwg.mxu0
        %v399 = vsel %vm352, %v394, -inf
        %400 = vmax.xlane.f32.xlu0 %v399
        %v401 = vpop.xlane.xlu0 %400
        %v402 = vsub.f32 %v394, %v401
        %v403 = vmul.f32 %v402, 1.442695
        %v404 = vpow.pop %v403
        %v405 = vsel %vm352, %v404, 0.0
        %406 = vadd.xlane.f32.xlu0 %v405
        %v407 = vpop.xlane.xlu0 %406
        %v408 = vrcp.pop %v407
        %v409 = vmul.f32 %v404, %v408
        %410 = vst.msk [vmem:[%s238] sm:$0xff] %vm352, %v409
        %v411 = vpack.c.bf16 %v409, %v409
        %v413 = vsel %vm352, %v411, 0
        %vm415 = vcmask 1043456
        %v417 = vsel %vm415, %v348, 0
        %419 = vmatprep.subr.bf16.mxu0 0
        %420 = vmatpush1.bf16.msra.mxu0 %v417
        %421 = vmatprep.subr.bf16.mxu0 0
        %422 = vmatpush1.bf16.msra.mxu0 0
        %423 = vmatprep.subr.bf16.mxu0 0
        %424 = vmatpush1.bf16.msra.mxu0 0
        %425 = vmatprep.subr.bf16.mxu0 0
        %426 = vmatpush1.bf16.msra.mxu0 0
        %427 = vmatprep.subr.bf16.mxu0 0
        %428 = vmatpush1.bf16.msra.mxu0 0
        %429 = vmatprep.subr.bf16.mxu0 0
        %430 = vmatpush1.bf16.msra.mxu0 0
        %431 = vmatprep.subr.bf16.mxu0 0
        %432 = vmatpush1.bf16.msra.mxu0 0
        %433 = vmatprep.subr.bf16.mxu0 0
        %434 = vmatpush1.bf16.msra.mxu0 0
        %435 = vmatprep.subr.bf16.mxu0 0
        %436 = vmatpush1.bf16.msra.mxu0 0
        %437 = vmatprep.subr.bf16.mxu0 0
        %438 = vmatpush1.bf16.msra.mxu0 0
        %439 = vmatprep.subr.bf16.mxu0 0
        %440 = vmatpush1.bf16.msra.mxu0 0
        %441 = vmatprep.subr.bf16.mxu0 0
        %442 = vmatpush1.bf16.msra.mxu0 0
        %443 = vmatprep.subr.bf16.mxu0 0
        %444 = vmatpush1.bf16.msra.mxu0 0
        %445 = vmatprep.subr.bf16.mxu0 0
        %446 = vmatpush1.bf16.msra.mxu0 0
        %447 = vmatprep.subr.bf16.mxu0 0
        %448 = vmatpush1.bf16.msra.mxu0 0
        %449 = vmatprep.subr.bf16.mxu0 0
        %450 = vmatpush1.bf16.msra.mxu0 0
        %451 = vmatprep.mubr.bf16.mxu0 0
        %452 = vmatmul.mubr.bf16.gmra.mrb[0].mxu0 %v413
        %v453 = vpop.f32.mrb[0].mxu0
        %v454 = vadd.f32 0.0, %v453
        %v455 = vpop.f32.mrb[0].mxu0
        %v456 = vpop.f32.mrb[0].mxu0
        %v457 = vpop.f32.mrb[0].mxu0
        %458 = vdwg.mxu0
        %459 = vrot.lane.b32.xlu0 %v347, 120
        %v460 = vpop.permute.xlu0 %459
        %461 = vrot.lane.b32.xlu0 %v347, 56
        %v462 = vpop.permute.xlu0 %461
        %v464 = vsel %vm352, %v460, 0
        %v467 = vsel %vm352, %v462, 0
        %469 = vmatprep.subr.bf16.mxu0 0
        %470 = vmatpush1.bf16.xpose.msra.mxu0 %v467
        %471 = vmatprep.subr.bf16.mxu0 0
        %472 = vmatpush1.bf16.xpose.msra.mxu0 0
        %473 = vmatprep.subr.bf16.mxu0 0
        %474 = vmatpush1.bf16.xpose.msra.mxu0 0
        %475 = vmatprep.subr.bf16.mxu0 0
        %476 = vmatpush1.bf16.xpose.msra.mxu0 0
        %477 = vmatprep.subr.bf16.mxu0 0
        %478 = vmatpush1.bf16.xpose.msra.mxu0 0
        %479 = vmatprep.subr.bf16.mxu0 0
        %480 = vmatpush1.bf16.xpose.msra.mxu0 0
        %481 = vmatprep.subr.bf16.mxu0 0
        %482 = vmatpush1.bf16.xpose.msra.mxu0 0
        %483 = vmatprep.subr.bf16.mxu0 0
        %484 = vmatpush1.bf16.xpose.msra.mxu0 0
        %485 = vmatprep.subr.bf16.mxu0 0
        %486 = vmatpush1.bf16.xpose.msra.mxu0 0
        %487 = vmatprep.subr.bf16.mxu0 0
        %488 = vmatpush1.bf16.xpose.msra.mxu0 0
        %489 = vmatprep.subr.bf16.mxu0 0
        %490 = vmatpush1.bf16.xpose.msra.mxu0 0
        %491 = vmatprep.subr.bf16.mxu0 0
        %492 = vmatpush1.bf16.xpose.msra.mxu0 0
        %493 = vmatprep.subr.bf16.mxu0 0
        %494 = vmatpush1.bf16.xpose.msra.mxu0 0
        %495 = vmatprep.subr.bf16.mxu0 0
        %496 = vmatpush1.bf16.xpose.msra.mxu0 0
        %497 = vmatprep.subr.bf16.mxu0 0
        %498 = vmatpush1.bf16.xpose.msra.mxu0 0
        %499 = vmatprep.subr.bf16.mxu0 0
        %500 = vmatpush1.bf16.xpose.msra.mxu0 0
        %501 = vmatprep.mubr.bf16.mxu0 0
        %502 = vmatmul.mubr.bf16.gmra.mrb[0].mxu0 %v464
        %v503 = vpop.f32.mrb[0].mxu0
        %v504 = vadd.f32 0.0, %v503
        %v505 = vpop.f32.mrb[0].mxu0
        %v506 = vpop.f32.mrb[0].mxu0
        %v507 = vpop.f32.mrb[0].mxu0
        %508 = vdwg.mxu0
        %v509 = vsel %vm352, %v504, -inf
        %510 = vmax.xlane.f32.xlu0 %v509
        %v511 = vpop.xlane.xlu0 %510
        %v512 = vsub.f32 %v504, %v511
        %v513 = vmul.f32 %v512, 1.442695
        %v514 = vpow.pop %v513
        %v515 = vsel %vm352, %v514, 0.0
        %516 = vadd.xlane.f32.xlu0 %v515
        %v517 = vpop.xlane.xlu0 %516
        %v518 = vrcp.pop %v517
        %v519 = vmul.f32 %v514, %v518
        %s520 = scalar_lea.vmem %s238, 8 [#allocation8]
        %521 = vst.msk [vmem:[%s520] sm:$0xff] %vm352, %v519
        %v522 = vpack.c.bf16 %v519, %v519
        %524 = vrot.lane.b32.xlu0 %v348, 120
        %v525 = vpop.permute.xlu0 %524
        %v527 = vsel %vm352, %v522, 0
        %v530 = vsel %vm415, %v525, 0
        %532 = vmatprep.subr.bf16.mxu0 0
        %533 = vmatpush1.bf16.msra.mxu0 %v530
        %534 = vmatprep.subr.bf16.mxu0 0
        %535 = vmatpush1.bf16.msra.mxu0 0
        %536 = vmatprep.subr.bf16.mxu0 0
        %537 = vmatpush1.bf16.msra.mxu0 0
        %538 = vmatprep.subr.bf16.mxu0 0
        %539 = vmatpush1.bf16.msra.mxu0 0
        %540 = vmatprep.subr.bf16.mxu0 0
        %541 = vmatpush1.bf16.msra.mxu0 0
        %542 = vmatprep.subr.bf16.mxu0 0
        %543 = vmatpush1.bf16.msra.mxu0 0
        %544 = vmatprep.subr.bf16.mxu0 0
        %545 = vmatpush1.bf16.msra.mxu0 0
        %546 = vmatprep.subr.bf16.mxu0 0
        %547 = vmatpush1.bf16.msra.mxu0 0
        %548 = vmatprep.subr.bf16.mxu0 0
        %549 = vmatpush1.bf16.msra.mxu0 0
        %550 = vmatprep.subr.bf16.mxu0 0
        %551 = vmatpush1.bf16.msra.mxu0 0
        %552 = vmatprep.subr.bf16.mxu0 0
        %553 = vmatpush1.bf16.msra.mxu0 0
        %554 = vmatprep.subr.bf16.mxu0 0
        %555 = vmatpush1.bf16.msra.mxu0 0
        %556 = vmatprep.subr.bf16.mxu0 0
        %557 = vmatpush1.bf16.msra.mxu0 0
        %558 = vmatprep.subr.bf16.mxu0 0
        %559 = vmatpush1.bf16.msra.mxu0 0
        %560 = vmatprep.subr.bf16.mxu0 0
        %561 = vmatpush1.bf16.msra.mxu0 0
        %562 = vmatprep.subr.bf16.mxu0 0
        %563 = vmatpush1.bf16.msra.mxu0 0
        %564 = vmatprep.mubr.bf16.mxu0 0
        %565 = vmatmul.mubr.bf16.gmra.mrb[0].mxu0 %v527
        %v566 = vpop.f32.mrb[0].mxu0
        %v567 = vadd.f32 0.0, %v566
        %v568 = vpop.f32.mrb[0].mxu0
        %v569 = vpop.f32.mrb[0].mxu0
        %v570 = vpop.f32.mrb[0].mxu0
        %571 = vdwg.mxu0
        %572 = vrot.lane.b32.xlu0 %v347, 112
        %v573 = vpop.permute.xlu0 %572
        %574 = vrot.lane.b32.xlu0 %v347, 48
        %v575 = vpop.permute.xlu0 %574
        %v577 = vsel %vm352, %v573, 0
        %v580 = vsel %vm352, %v575, 0
        %582 = vmatprep.subr.bf16.mxu0 0
        %583 = vmatpush1.bf16.xpose.msra.mxu0 %v580
        %584 = vmatprep.subr.bf16.mxu0 0
        %585 = vmatpush1.bf16.xpose.msra.mxu0 0
        %586 = vmatprep.subr.bf16.mxu0 0
        %587 = vmatpush1.bf16.xpose.msra.mxu0 0
        %588 = vmatprep.subr.bf16.mxu0 0
        %589 = vmatpush1.bf16.xpose.msra.mxu0 0
        %590 = vmatprep.subr.bf16.mxu0 0
        %591 = vmatpush1.bf16.xpose.msra.mxu0 0
        %592 = vmatprep.subr.bf16.mxu0 0
        %593 = vmatpush1.bf16.xpose.msra.mxu0 0
        %594 = vmatprep.subr.bf16.mxu0 0
        %595 = vmatpush1.bf16.xpose.msra.mxu0 0
        %596 = vmatprep.subr.bf16.mxu0 0
        %597 = vmatpush1.bf16.xpose.msra.mxu0 0
        %598 = vmatprep.subr.bf16.mxu0 0
        %599 = vmatpush1.bf16.xpose.msra.mxu0 0
        %600 = vmatprep.subr.bf16.mxu0 0
        %601 = vmatpush1.bf16.xpose.msra.mxu0 0
        %602 = vmatprep.subr.bf16.mxu0 0
        %603 = vmatpush1.bf16.xpose.msra.mxu0 0
        %604 = vmatprep.subr.bf16.mxu0 0
        %605 = vmatpush1.bf16.xpose.msra.mxu0 0
        %606 = vmatprep.subr.bf16.mxu0 0
        %607 = vmatpush1.bf16.xpose.msra.mxu0 0
        %608 = vmatprep.subr.bf16.mxu0 0
        %609 = vmatpush1.bf16.xpose.msra.mxu0 0
        %610 = vmatprep.subr.bf16.mxu0 0
        %611 = vmatpush1.bf16.xpose.msra.mxu0 0
        %612 = vmatprep.subr.bf16.mxu0 0
        %613 = vmatpush1.bf16.xpose.msra.mxu0 0
        %614 = vmatprep.mubr.bf16.mxu0 0
        %615 = vmatmul.mubr.bf16.gmra.mrb[0].mxu0 %v577
        %v616 = vpop.f32.mrb[0].mxu0
        %v617 = vadd.f32 0.0, %v616
        %v618 = vpop.f32.mrb[0].mxu0
        %v619 = vpop.f32.mrb[0].mxu0
        %v620 = vpop.f32.mrb[0].mxu0
        %621 = vdwg.mxu0
        %v622 = vsel %vm352, %v617, -inf
        %623 = vmax.xlane.f32.xlu0 %v622
        %v624 = vpop.xlane.xlu0 %623
        %v625 = vsub.f32 %v617, %v624
        %v626 = vmul.f32 %v625, 1.442695
        %v627 = vpow.pop %v626
        %v628 = vsel %vm352, %v627, 0.0
        %629 = vadd.xlane.f32.xlu0 %v628
        %v630 = vpop.xlane.xlu0 %629
        %v631 = vrcp.pop %v630
        %v632 = vmul.f32 %v627, %v631
        %s633 = scalar_lea.vmem %s238, 16 [#allocation8]
        %634 = vst.msk [vmem:[%s633] sm:$0xff] %vm352, %v632
        %v635 = vpack.c.bf16 %v632, %v632
        %636 = vrot.lane.b32.xlu0 %v348, 112
        %v637 = vpop.permute.xlu0 %636
        %v639 = vsel %vm352, %v635, 0
        %v642 = vsel %vm415, %v637, 0
        %644 = vmatprep.subr.bf16.mxu0 0
        %645 = vmatpush1.bf16.msra.mxu0 %v642
        %646 = vmatprep.subr.bf16.mxu0 0
        %647 = vmatpush1.bf16.msra.mxu0 0
        %648 = vmatprep.subr.bf16.mxu0 0
        %649 = vmatpush1.bf16.msra.mxu0 0
        %650 = vmatprep.subr.bf16.mxu0 0
        %651 = vmatpush1.bf16.msra.mxu0 0
        %652 = vmatprep.subr.bf16.mxu0 0
        %653 = vmatpush1.bf16.msra.mxu0 0
        %654 = vmatprep.subr.bf16.mxu0 0
        %655 = vmatpush1.bf16.msra.mxu0 0
        %656 = vmatprep.subr.bf16.mxu0 0
        %657 = vmatpush1.bf16.msra.mxu0 0
        %658 = vmatprep.subr.bf16.mxu0 0
        %659 = vmatpush1.bf16.msra.mxu0 0
        %660 = vmatprep.subr.bf16.mxu0 0
        %661 = vmatpush1.bf16.msra.mxu0 0
        %662 = vmatprep.subr.bf16.mxu0 0
        %663 = vmatpush1.bf16.msra.mxu0 0
        %664 = vmatprep.subr.bf16.mxu0 0
        %665 = vmatpush1.bf16.msra.mxu0 0
        %666 = vmatprep.subr.bf16.mxu0 0
        %667 = vmatpush1.bf16.msra.mxu0 0
        %668 = vmatprep.subr.bf16.mxu0 0
        %669 = vmatpush1.bf16.msra.mxu0 0
        %670 = vmatprep.subr.bf16.mxu0 0
        %671 = vmatpush1.bf16.msra.mxu0 0
        %672 = vmatprep.subr.bf16.mxu0 0
        %673 = vmatpush1.bf16.msra.mxu0 0
        %674 = vmatprep.subr.bf16.mxu0 0
        %675 = vmatpush1.bf16.msra.mxu0 0
        %676 = vmatprep.mubr.bf16.mxu0 0
        %677 = vmatmul.mubr.bf16.gmra.mrb[0].mxu0 %v639
        %v678 = vpop.f32.mrb[0].mxu0
        %v679 = vadd.f32 0.0, %v678
        %v680 = vpop.f32.mrb[0].mxu0
        %v681 = vpop.f32.mrb[0].mxu0
        %v682 = vpop.f32.mrb[0].mxu0
        %683 = vdwg.mxu0
        %684 = vrot.lane.b32.xlu0 %v347, 104
        %v685 = vpop.permute.xlu0 %684
        %686 = vrot.lane.b32.xlu0 %v347, 40
        %v687 = vpop.permute.xlu0 %686
        %v689 = vsel %vm352, %v685, 0
        %v692 = vsel %vm352, %v687, 0
        %694 = vmatprep.subr.bf16.mxu0 0
        %695 = vmatpush1.bf16.xpose.msra.mxu0 %v692
        %696 = vmatprep.subr.bf16.mxu0 0
        %697 = vmatpush1.bf16.xpose.msra.mxu0 0
        %698 = vmatprep.subr.bf16.mxu0 0
        %699 = vmatpush1.bf16.xpose.msra.mxu0 0
        %700 = vmatprep.subr.bf16.mxu0 0
        %701 = vmatpush1.bf16.xpose.msra.mxu0 0
        %702 = vmatprep.subr.bf16.mxu0 0
        %703 = vmatpush1.bf16.xpose.msra.mxu0 0
        %704 = vmatprep.subr.bf16.mxu0 0
        %705 = vmatpush1.bf16.xpose.msra.mxu0 0
        %706 = vmatprep.subr.bf16.mxu0 0
        %707 = vmatpush1.bf16.xpose.msra.mxu0 0
        %708 = vmatprep.subr.bf16.mxu0 0
        %709 = vmatpush1.bf16.xpose.msra.mxu0 0
        %710 = vmatprep.subr.bf16.mxu0 0
        %711 = vmatpush1.bf16.xpose.msra.mxu0 0
        %712 = vmatprep.subr.bf16.mxu0 0
        %713 = vmatpush1.bf16.xpose.msra.mxu0 0
        %714 = vmatprep.subr.bf16.mxu0 0
        %715 = vmatpush1.bf16.xpose.msra.mxu0 0
        %716 = vmatprep.subr.bf16.mxu0 0
        %717 = vmatpush1.bf16.xpose.msra.mxu0 0
        %718 = vmatprep.subr.bf16.mxu0 0
        %719 = vmatpush1.bf16.xpose.msra.mxu0 0
        %720 = vmatprep.subr.bf16.mxu0 0
        %721 = vmatpush1.bf16.xpose.msra.mxu0 0
        %722 = vmatprep.subr.bf16.mxu0 0
        %723 = vmatpush1.bf16.xpose.msra.mxu0 0
        %724 = vmatprep.subr.bf16.mxu0 0
        %725 = vmatpush1.bf16.xpose.msra.mxu0 0
        %726 = vmatprep.mubr.bf16.mxu0 0
        %727 = vmatmul.mubr.bf16.gmra.mrb[0].mxu0 %v689
        %v728 = vpop.f32.mrb[0].mxu0
        %v729 = vadd.f32 0.0, %v728
        %v730 = vpop.f32.mrb[0].mxu0
        %v731 = vpop.f32.mrb[0].mxu0
        %v732 = vpop.f32.mrb[0].mxu0
        %733 = vdwg.mxu0
        %v734 = vsel %vm352, %v729, -inf
        %735 = vmax.xlane.f32.xlu0 %v734
        %v736 = vpop.xlane.xlu0 %735
        %v737 = vsub.f32 %v729, %v736
        %v738 = vmul.f32 %v737, 1.442695
        %v739 = vpow.pop %v738
        %v740 = vsel %vm352, %v739, 0.0
        %741 = vadd.xlane.f32.xlu0 %v740
        %v742 = vpop.xlane.xlu0 %741
        %v743 = vrcp.pop %v742
        %v744 = vmul.f32 %v739, %v743
        %s745 = scalar_lea.vmem %s238, 24 [#allocation8]
        %746 = vst.msk [vmem:[%s745] sm:$0xff] %vm352, %v744
        %v747 = vpack.c.bf16 %v744, %v744
        %748 = vrot.lane.b32.xlu0 %v348, 104
        %v749 = vpop.permute.xlu0 %748
        %v751 = vsel %vm352, %v747, 0
        %v754 = vsel %vm415, %v749, 0
        %756 = vmatprep.subr.bf16.mxu0 0
        %757 = vmatpush1.bf16.msra.mxu0 %v754
        %758 = vmatprep.subr.bf16.mxu0 0
        %759 = vmatpush1.bf16.msra.mxu0 0
        %760 = vmatprep.subr.bf16.mxu0 0
        %761 = vmatpush1.bf16.msra.mxu0 0
        %762 = vmatprep.subr.bf16.mxu0 0
        %763 = vmatpush1.bf16.msra.mxu0 0
        %764 = vmatprep.subr.bf16.mxu0 0
        %765 = vmatpush1.bf16.msra.mxu0 0
        %766 = vmatprep.subr.bf16.mxu0 0
        %767 = vmatpush1.bf16.msra.mxu0 0
        %768 = vmatprep.subr.bf16.mxu0 0
        %769 = vmatpush1.bf16.msra.mxu0 0
        %770 = vmatprep.subr.bf16.mxu0 0
        %771 = vmatpush1.bf16.msra.mxu0 0
        %772 = vmatprep.subr.bf16.mxu0 0
        %773 = vmatpush1.bf16.msra.mxu0 0
        %774 = vmatprep.subr.bf16.mxu0 0
        %775 = vmatpush1.bf16.msra.mxu0 0
        %776 = vmatprep.subr.bf16.mxu0 0
        %777 = vmatpush1.bf16.msra.mxu0 0
        %778 = vmatprep.subr.bf16.mxu0 0
        %779 = vmatpush1.bf16.msra.mxu0 0
        %780 = vmatprep.subr.bf16.mxu0 0
        %781 = vmatpush1.bf16.msra.mxu0 0
        %782 = vmatprep.subr.bf16.mxu0 0
        %783 = vmatpush1.bf16.msra.mxu0 0
        %784 = vmatprep.subr.bf16.mxu0 0
        %785 = vmatpush1.bf16.msra.mxu0 0
        %786 = vmatprep.subr.bf16.mxu0 0
        %787 = vmatpush1.bf16.msra.mxu0 0
        %788 = vmatprep.mubr.bf16.mxu0 0
        %789 = vmatmul.mubr.bf16.gmra.mrb[0].mxu0 %v751
        %v790 = vpop.f32.mrb[0].mxu0
        %v791 = vadd.f32 0.0, %v790
        %v792 = vpop.f32.mrb[0].mxu0
        %v793 = vpop.f32.mrb[0].mxu0
        %v794 = vpop.f32.mrb[0].mxu0
        %795 = vdwg.mxu0
        %796 = vrot.lane.b32.xlu0 %v347, 96
        %v797 = vpop.permute.xlu0 %796
        %798 = vrot.lane.b32.xlu0 %v347, 32
        %v799 = vpop.permute.xlu0 %798
        %v801 = vsel %vm352, %v797, 0
        %v804 = vsel %vm352, %v799, 0
        %806 = vmatprep.subr.bf16.mxu0 0
        %807 = vmatpush1.bf16.xpose.msra.mxu0 %v804
        %808 = vmatprep.subr.bf16.mxu0 0
        %809 = vmatpush1.bf16.xpose.msra.mxu0 0
        %810 = vmatprep.subr.bf16.mxu0 0
        %811 = vmatpush1.bf16.xpose.msra.mxu0 0
        %812 = vmatprep.subr.bf16.mxu0 0
        %813 = vmatpush1.bf16.xpose.msra.mxu0 0
        %814 = vmatprep.subr.bf16.mxu0 0
        %815 = vmatpush1.bf16.xpose.msra.mxu0 0
        %816 = vmatprep.subr.bf16.mxu0 0
        %817 = vmatpush1.bf16.xpose.msra.mxu0 0
        %818 = vmatprep.subr.bf16.mxu0 0
        %819 = vmatpush1.bf16.xpose.msra.mxu0 0
        %820 = vmatprep.subr.bf16.mxu0 0
        %821 = vmatpush1.bf16.xpose.msra.mxu0 0
        %822 = vmatprep.subr.bf16.mxu0 0
        %823 = vmatpush1.bf16.xpose.msra.mxu0 0
        %824 = vmatprep.subr.bf16.mxu0 0
        %825 = vmatpush1.bf16.xpose.msra.mxu0 0
        %826 = vmatprep.subr.bf16.mxu0 0
        %827 = vmatpush1.bf16.xpose.msra.mxu0 0
        %828 = vmatprep.subr.bf16.mxu0 0
        %829 = vmatpush1.bf16.xpose.msra.mxu0 0
        %830 = vmatprep.subr.bf16.mxu0 0
        %831 = vmatpush1.bf16.xpose.msra.mxu0 0
        %832 = vmatprep.subr.bf16.mxu0 0
        %833 = vmatpush1.bf16.xpose.msra.mxu0 0
        %834 = vmatprep.subr.bf16.mxu0 0
        %835 = vmatpush1.bf16.xpose.msra.mxu0 0
        %836 = vmatprep.subr.bf16.mxu0 0
        %837 = vmatpush1.bf16.xpose.msra.mxu0 0
        %838 = vmatprep.mubr.bf16.mxu0 0
        %839 = vmatmul.mubr.bf16.gmra.mrb[0].mxu0 %v801
        %v840 = vpop.f32.mrb[0].mxu0
        %v841 = vadd.f32 0.0, %v840
        %v842 = vpop.f32.mrb[0].mxu0
        %v843 = vpop.f32.mrb[0].mxu0
        %v844 = vpop.f32.mrb[0].mxu0
        %845 = vdwg.mxu0
        %v846 = vsel %vm352, %v841, -inf
        %847 = vmax.xlane.f32.xlu0 %v846
        %v848 = vpop.xlane.xlu0 %847
        %v849 = vsub.f32 %v841, %v848
        %v850 = vmul.f32 %v849, 1.442695
        %v851 = vpow.pop %v850
        %v852 = vsel %vm352, %v851, 0.0
        %853 = vadd.xlane.f32.xlu0 %v852
        %v854 = vpop.xlane.xlu0 %853
        %v855 = vrcp.pop %v854
        %v856 = vmul.f32 %v851, %v855
        %s857 = scalar_lea.vmem %s238, 32 [#allocation8]
        %858 = vst.msk [vmem:[%s857] sm:$0xff] %vm352, %v856
        %v859 = vpack.c.bf16 %v856, %v856
        %860 = vrot.lane.b32.xlu0 %v348, 96
        %v861 = vpop.permute.xlu0 %860
        %v863 = vsel %vm352, %v859, 0
        %v866 = vsel %vm415, %v861, 0
        %868 = vmatprep.subr.bf16.mxu0 0
        %869 = vmatpush1.bf16.msra.mxu0 %v866
        %870 = vmatprep.subr.bf16.mxu0 0
        %871 = vmatpush1.bf16.msra.mxu0 0
        %872 = vmatprep.subr.bf16.mxu0 0
        %873 = vmatpush1.bf16.msra.mxu0 0
        %874 = vmatprep.subr.bf16.mxu0 0
        %875 = vmatpush1.bf16.msra.mxu0 0
        %876 = vmatprep.subr.bf16.mxu0 0
        %877 = vmatpush1.bf16.msra.mxu0 0
        %878 = vmatprep.subr.bf16.mxu0 0
        %879 = vmatpush1.bf16.msra.mxu0 0
        %880 = vmatprep.subr.bf16.mxu0 0
        %881 = vmatpush1.bf16.msra.mxu0 0
        %882 = vmatprep.subr.bf16.mxu0 0
        %883 = vmatpush1.bf16.msra.mxu0 0
        %884 = vmatprep.subr.bf16.mxu0 0
        %885 = vmatpush1.bf16.msra.mxu0 0
        %886 = vmatprep.subr.bf16.mxu0 0
        %887 = vmatpush1.bf16.msra.mxu0 0
        %888 = vmatprep.subr.bf16.mxu0 0
        %889 = vmatpush1.bf16.msra.mxu0 0
        %890 = vmatprep.subr.bf16.mxu0 0
        %891 = vmatpush1.bf16.msra.mxu0 0
        %892 = vmatprep.subr.bf16.mxu0 0
        %893 = vmatpush1.bf16.msra.mxu0 0
        %894 = vmatprep.subr.bf16.mxu0 0
        %895 = vmatpush1.bf16.msra.mxu0 0
        %896 = vmatprep.subr.bf16.mxu0 0
        %897 = vmatpush1.bf16.msra.mxu0 0
        %898 = vmatprep.subr.bf16.mxu0 0
        %899 = vmatpush1.bf16.msra.mxu0 0
        %900 = vmatprep.mubr.bf16.mxu0 0
        %901 = vmatmul.mubr.bf16.gmra.mrb[0].mxu0 %v863
        %v902 = vpop.f32.mrb[0].mxu0
        %v903 = vadd.f32 0.0, %v902
        %v904 = vpop.f32.mrb[0].mxu0
        %v905 = vpop.f32.mrb[0].mxu0
        %v906 = vpop.f32.mrb[0].mxu0
        %907 = vdwg.mxu0
        %908 = vrot.lane.b32.xlu0 %v347, 88
        %v909 = vpop.permute.xlu0 %908
        %910 = vrot.lane.b32.xlu0 %v347, 24
        %v911 = vpop.permute.xlu0 %910
        %v913 = vsel %vm352, %v909, 0
        %v916 = vsel %vm352, %v911, 0
        %918 = vmatprep.subr.bf16.mxu0 0
        %919 = vmatpush1.bf16.xpose.msra.mxu0 %v916
        %920 = vmatprep.subr.bf16.mxu0 0
        %921 = vmatpush1.bf16.xpose.msra.mxu0 0
        %922 = vmatprep.subr.bf16.mxu0 0
        %923 = vmatpush1.bf16.xpose.msra.mxu0 0
        %924 = vmatprep.subr.bf16.mxu0 0
        %925 = vmatpush1.bf16.xpose.msra.mxu0 0
        %926 = vmatprep.subr.bf16.mxu0 0
        %927 = vmatpush1.bf16.xpose.msra.mxu0 0
        %928 = vmatprep.subr.bf16.mxu0 0
        %929 = vmatpush1.bf16.xpose.msra.mxu0 0
        %930 = vmatprep.subr.bf16.mxu0 0
        %931 = vmatpush1.bf16.xpose.msra.mxu0 0
        %932 = vmatprep.subr.bf16.mxu0 0
        %933 = vmatpush1.bf16.xpose.msra.mxu0 0
        %934 = vmatprep.subr.bf16.mxu0 0
        %935 = vmatpush1.bf16.xpose.msra.mxu0 0
        %936 = vmatprep.subr.bf16.mxu0 0
        %937 = vmatpush1.bf16.xpose.msra.mxu0 0
        %938 = vmatprep.subr.bf16.mxu0 0
        %939 = vmatpush1.bf16.xpose.msra.mxu0 0
        %940 = vmatprep.subr.bf16.mxu0 0
        %941 = vmatpush1.bf16.xpose.msra.mxu0 0
        %942 = vmatprep.subr.bf16.mxu0 0
        %943 = vmatpush1.bf16.xpose.msra.mxu0 0
        %944 = vmatprep.subr.bf16.mxu0 0
        %945 = vmatpush1.bf16.xpose.msra.mxu0 0
        %946 = vmatprep.subr.bf16.mxu0 0
        %947 = vmatpush1.bf16.xpose.msra.mxu0 0
        %948 = vmatprep.subr.bf16.mxu0 0
        %949 = vmatpush1.bf16.xpose.msra.mxu0 0
        %950 = vmatprep.mubr.bf16.mxu0 0
        %951 = vmatmul.mubr.bf16.gmra.mrb[0].mxu0 %v913
        %v952 = vpop.f32.mrb[0].mxu0
        %v953 = vadd.f32 0.0, %v952
        %v954 = vpop.f32.mrb[0].mxu0
        %v955 = vpop.f32.mrb[0].mxu0
        %v956 = vpop.f32.mrb[0].mxu0
        %957 = vdwg.mxu0
        %v958 = vsel %vm352, %v953, -inf
        %959 = vmax.xlane.f32.xlu0 %v958
        %v960 = vpop.xlane.xlu0 %959
        %v961 = vsub.f32 %v953, %v960
        %v962 = vmul.f32 %v961, 1.442695
        %v963 = vpow.pop %v962
        %v964 = vsel %vm352, %v963, 0.0
        %965 = vadd.xlane.f32.xlu0 %v964
        %v966 = vpop.xlane.xlu0 %965
        %v967 = vrcp.pop %v966
        %v968 = vmul.f32 %v963, %v967
        %s969 = scalar_lea.vmem %s238, 40 [#allocation8]
        %970 = vst.msk [vmem:[%s969] sm:$0xff] %vm352, %v968
        %v971 = vpack.c.bf16 %v968, %v968
        %972 = vrot.lane.b32.xlu0 %v348, 88
        %v973 = vpop.permute.xlu0 %972
        %v975 = vsel %vm352, %v971, 0
        %v978 = vsel %vm415, %v973, 0
        %980 = vmatprep.subr.bf16.mxu0 0
        %981 = vmatpush1.bf16.msra.mxu0 %v978
        %982 = vmatprep.subr.bf16.mxu0 0
        %983 = vmatpush1.bf16.msra.mxu0 0
        %984 = vmatprep.subr.bf16.mxu0 0
        %985 = vmatpush1.bf16.msra.mxu0 0
        %986 = vmatprep.subr.bf16.mxu0 0
        %987 = vmatpush1.bf16.msra.mxu0 0
        %988 = vmatprep.subr.bf16.mxu0 0
        %989 = vmatpush1.bf16.msra.mxu0 0
        %990 = vmatprep.subr.bf16.mxu0 0
        %991 = vmatpush1.bf16.msra.mxu0 0
        %992 = vmatprep.subr.bf16.mxu0 0
        %993 = vmatpush1.bf16.msra.mxu0 0
        %994 = vmatprep.subr.bf16.mxu0 0
        %995 = vmatpush1.bf16.msra.mxu0 0
        %996 = vmatprep.subr.bf16.mxu0 0
        %997 = vmatpush1.bf16.msra.mxu0 0
        %998 = vmatprep.subr.bf16.mxu0 0
        %999 = vmatpush1.bf16.msra.mxu0 0
        %1000 = vmatprep.subr.bf16.mxu0 0
        %1001 = vmatpush1.bf16.msra.mxu0 0
        %1002 = vmatprep.subr.bf16.mxu0 0
        %1003 = vmatpush1.bf16.msra.mxu0 0
        %1004 = vmatprep.subr.bf16.mxu0 0
        %1005 = vmatpush1.bf16.msra.mxu0 0
        %1006 = vmatprep.subr.bf16.mxu0 0
        %1007 = vmatpush1.bf16.msra.mxu0 0
        %1008 = vmatprep.subr.bf16.mxu0 0
        %1009 = vmatpush1.bf16.msra.mxu0 0
        %1010 = vmatprep.subr.bf16.mxu0 0
        %1011 = vmatpush1.bf16.msra.mxu0 0
        %1012 = vmatprep.mubr.bf16.mxu0 0
        %1013 = vmatmul.mubr.bf16.gmra.mrb[0].mxu0 %v975
        %v1014 = vpop.f32.mrb[0].mxu0
        %v1015 = vadd.f32 0.0, %v1014
        %v1016 = vpop.f32.mrb[0].mxu0
        %v1017 = vpop.f32.mrb[0].mxu0
        %v1018 = vpop.f32.mrb[0].mxu0
        %1019 = vdwg.mxu0
        %1020 = vrot.lane.b32.xlu0 %v347, 80
        %v1021 = vpop.permute.xlu0 %1020
        %1022 = vrot.lane.b32.xlu0 %v347, 16
        %v1023 = vpop.permute.xlu0 %1022
        %v1025 = vsel %vm352, %v1021, 0
        %v1028 = vsel %vm352, %v1023, 0
        %1030 = vmatprep.subr.bf16.mxu0 0
        %1031 = vmatpush1.bf16.xpose.msra.mxu0 %v1028
        %1032 = vmatprep.subr.bf16.mxu0 0
        %1033 = vmatpush1.bf16.xpose.msra.mxu0 0
        %1034 = vmatprep.subr.bf16.mxu0 0
        %1035 = vmatpush1.bf16.xpose.msra.mxu0 0
        %1036 = vmatprep.subr.bf16.mxu0 0
        %1037 = vmatpush1.bf16.xpose.msra.mxu0 0
        %1038 = vmatprep.subr.bf16.mxu0 0
        %1039 = vmatpush1.bf16.xpose.msra.mxu0 0
        %1040 = vmatprep.subr.bf16.mxu0 0
        %1041 = vmatpush1.bf16.xpose.msra.mxu0 0
        %1042 = vmatprep.subr.bf16.mxu0 0
        %1043 = vmatpush1.bf16.xpose.msra.mxu0 0
        %1044 = vmatprep.subr.bf16.mxu0 0
        %1045 = vmatpush1.bf16.xpose.msra.mxu0 0
        %1046 = vmatprep.subr.bf16.mxu0 0
        %1047 = vmatpush1.bf16.xpose.msra.mxu0 0
        %1048 = vmatprep.subr.bf16.mxu0 0
        %1049 = vmatpush1.bf16.xpose.msra.mxu0 0
        %1050 = vmatprep.subr.bf16.mxu0 0
        %1051 = vmatpush1.bf16.xpose.msra.mxu0 0
        %1052 = vmatprep.subr.bf16.mxu0 0
        %1053 = vmatpush1.bf16.xpose.msra.mxu0 0
        %1054 = vmatprep.subr.bf16.mxu0 0
        %1055 = vmatpush1.bf16.xpose.msra.mxu0 0
        %1056 = vmatprep.subr.bf16.mxu0 0
        %1057 = vmatpush1.bf16.xpose.msra.mxu0 0
        %1058 = vmatprep.subr.bf16.mxu0 0
        %1059 = vmatpush1.bf16.xpose.msra.mxu0 0
        %1060 = vmatprep.subr.bf16.mxu0 0
        %1061 = vmatpush1.bf16.xpose.msra.mxu0 0
        %1062 = vmatprep.mubr.bf16.mxu0 0
        %1063 = vmatmul.mubr.bf16.gmra.mrb[0].mxu0 %v1025
        %v1064 = vpop.f32.mrb[0].mxu0
        %v1065 = vadd.f32 0.0, %v1064
        %v1066 = vpop.f32.mrb[0].mxu0
        %v1067 = vpop.f32.mrb[0].mxu0
        %v1068 = vpop.f32.mrb[0].mxu0
        %1069 = vdwg.mxu0
        %v1070 = vsel %vm352, %v1065, -inf
        %1071 = vmax.xlane.f32.xlu0 %v1070
        %v1072 = vpop.xlane.xlu0 %1071
        %v1073 = vsub.f32 %v1065, %v1072
        %v1074 = vmul.f32 %v1073, 1.442695
        %v1075 = vpow.pop %v1074
        %v1076 = vsel %vm352, %v1075, 0.0
        %1077 = vadd.xlane.f32.xlu0 %v1076
        %v1078 = vpop.xlane.xlu0 %1077
        %v1079 = vrcp.pop %v1078
        %v1080 = vmul.f32 %v1075, %v1079
        %s1081 = scalar_lea.vmem %s238, 48 [#allocation8]
        %1082 = vst.msk [vmem:[%s1081] sm:$0xff] %vm352, %v1080
        %v1083 = vpack.c.bf16 %v1080, %v1080
        %1084 = vrot.lane.b32.xlu0 %v348, 80
        %v1085 = vpop.permute.xlu0 %1084
        %v1087 = vsel %vm352, %v1083, 0
        %v1090 = vsel %vm415, %v1085, 0
        %1092 = vmatprep.subr.bf16.mxu0 0
        %1093 = vmatpush1.bf16.msra.mxu0 %v1090
        %1094 = vmatprep.subr.bf16.mxu0 0
        %1095 = vmatpush1.bf16.msra.mxu0 0
        %1096 = vmatprep.subr.bf16.mxu0 0
        %1097 = vmatpush1.bf16.msra.mxu0 0
        %1098 = vmatprep.subr.bf16.mxu0 0
        %1099 = vmatpush1.bf16.msra.mxu0 0
        %1100 = vmatprep.subr.bf16.mxu0 0
        %1101 = vmatpush1.bf16.msra.mxu0 0
        %1102 = vmatprep.subr.bf16.mxu0 0
        %1103 = vmatpush1.bf16.msra.mxu0 0
        %1104 = vmatprep.subr.bf16.mxu0 0
        %1105 = vmatpush1.bf16.msra.mxu0 0
        %1106 = vmatprep.subr.bf16.mxu0 0
        %1107 = vmatpush1.bf16.msra.mxu0 0
        %1108 = vmatprep.subr.bf16.mxu0 0
        %1109 = vmatpush1.bf16.msra.mxu0 0
        %1110 = vmatprep.subr.bf16.mxu0 0
        %1111 = vmatpush1.bf16.msra.mxu0 0
        %1112 = vmatprep.subr.bf16.mxu0 0
        %1113 = vmatpush1.bf16.msra.mxu0 0
        %1114 = vmatprep.subr.bf16.mxu0 0
        %1115 = vmatpush1.bf16.msra.mxu0 0
        %1116 = vmatprep.subr.bf16.mxu0 0
        %1117 = vmatpush1.bf16.msra.mxu0 0
        %1118 = vmatprep.subr.bf16.mxu0 0
        %1119 = vmatpush1.bf16.msra.mxu0 0
        %1120 = vmatprep.subr.bf16.mxu0 0
        %1121 = vmatpush1.bf16.msra.mxu0 0
        %1122 = vmatprep.subr.bf16.mxu0 0
        %1123 = vmatpush1.bf16.msra.mxu0 0
        %1124 = vmatprep.mubr.bf16.mxu0 0
        %1125 = vmatmul.mubr.bf16.gmra.mrb[0].mxu0 %v1087
        %v1126 = vpop.f32.mrb[0].mxu0
        %v1127 = vadd.f32 0.0, %v1126
        %v1128 = vpop.f32.mrb[0].mxu0
        %v1129 = vpop.f32.mrb[0].mxu0
        %v1130 = vpop.f32.mrb[0].mxu0
        %1131 = vdwg.mxu0
        %1132 = vrot.lane.b32.xlu0 %v347, 72
        %v1133 = vpop.permute.xlu0 %1132
        %1134 = vrot.lane.b32.xlu0 %v347, 8
        %v1135 = vpop.permute.xlu0 %1134
        %v1137 = vsel %vm352, %v1133, 0
        %v1140 = vsel %vm352, %v1135, 0
        %1142 = vmatprep.subr.bf16.mxu0 0
        %1143 = vmatpush1.bf16.xpose.msra.mxu0 %v1140
        %1144 = vmatprep.subr.bf16.mxu0 0
        %1145 = vmatpush1.bf16.xpose.msra.mxu0 0
        %1146 = vmatprep.subr.bf16.mxu0 0
        %1147 = vmatpush1.bf16.xpose.msra.mxu0 0
        %1148 = vmatprep.subr.bf16.mxu0 0
        %1149 = vmatpush1.bf16.xpose.msra.mxu0 0
        %1150 = vmatprep.subr.bf16.mxu0 0
        %1151 = vmatpush1.bf16.xpose.msra.mxu0 0
        %1152 = vmatprep.subr.bf16.mxu0 0
        %1153 = vmatpush1.bf16.xpose.msra.mxu0 0
        %1154 = vmatprep.subr.bf16.mxu0 0
        %1155 = vmatpush1.bf16.xpose.msra.mxu0 0
        %1156 = vmatprep.subr.bf16.mxu0 0
        %1157 = vmatpush1.bf16.xpose.msra.mxu0 0
        %1158 = vmatprep.subr.bf16.mxu0 0
        %1159 = vmatpush1.bf16.xpose.msra.mxu0 0
        %1160 = vmatprep.subr.bf16.mxu0 0
        %1161 = vmatpush1.bf16.xpose.msra.mxu0 0
        %1162 = vmatprep.subr.bf16.mxu0 0
        %1163 = vmatpush1.bf16.xpose.msra.mxu0 0
        %1164 = vmatprep.subr.bf16.mxu0 0
        %1165 = vmatpush1.bf16.xpose.msra.mxu0 0
        %1166 = vmatprep.subr.bf16.mxu0 0
        %1167 = vmatpush1.bf16.xpose.msra.mxu0 0
        %1168 = vmatprep.subr.bf16.mxu0 0
        %1169 = vmatpush1.bf16.xpose.msra.mxu0 0
        %1170 = vmatprep.subr.bf16.mxu0 0
        %1171 = vmatpush1.bf16.xpose.msra.mxu0 0
        %1172 = vmatprep.subr.bf16.mxu0 0
        %1173 = vmatpush1.bf16.xpose.msra.mxu0 0
        %1174 = vmatprep.mubr.bf16.mxu0 0
        %1175 = vmatmul.mubr.bf16.gmra.mrb[0].mxu0 %v1137
        %v1176 = vpop.f32.mrb[0].mxu0
        %v1177 = vadd.f32 0.0, %v1176
        %v1178 = vpop.f32.mrb[0].mxu0
        %v1179 = vpop.f32.mrb[0].mxu0
        %v1180 = vpop.f32.mrb[0].mxu0
        %1181 = vdwg.mxu0
        %v1182 = vsel %vm352, %v1177, -inf
        %1183 = vmax.xlane.f32.xlu0 %v1182
        %v1184 = vpop.xlane.xlu0 %1183
        %v1185 = vsub.f32 %v1177, %v1184
        %v1186 = vmul.f32 %v1185, 1.442695
        %v1187 = vpow.pop %v1186
        %v1188 = vsel %vm352, %v1187, 0.0
        %1189 = vadd.xlane.f32.xlu0 %v1188
        %v1190 = vpop.xlane.xlu0 %1189
        %v1191 = vrcp.pop %v1190
        %v1192 = vmul.f32 %v1187, %v1191
        %s1193 = scalar_lea.vmem %s238, 56 [#allocation8]
        %1194 = vst.msk [vmem:[%s1193] sm:$0xff] %vm352, %v1192
        %v1195 = vpack.c.bf16 %v1192, %v1192
        %1196 = vrot.lane.b32.xlu0 %v348, 72
        %v1197 = vpop.permute.xlu0 %1196
        %v1199 = vsel %vm352, %v1195, 0
        %v1202 = vsel %vm415, %v1197, 0
        %1204 = vmatprep.subr.bf16.mxu0 0
        %1205 = vmatpush1.bf16.msra.mxu0 %v1202
        %1206 = vmatprep.subr.bf16.mxu0 0
        %1207 = vmatpush1.bf16.msra.mxu0 0
        %1208 = vmatprep.subr.bf16.mxu0 0
        %1209 = vmatpush1.bf16.msra.mxu0 0
        %1210 = vmatprep.subr.bf16.mxu0 0
        %1211 = vmatpush1.bf16.msra.mxu0 0
        %1212 = vmatprep.subr.bf16.mxu0 0
        %1213 = vmatpush1.bf16.msra.mxu0 0
        %1214 = vmatprep.subr.bf16.mxu0 0
        %1215 = vmatpush1.bf16.msra.mxu0 0
        %1216 = vmatprep.subr.bf16.mxu0 0
        %1217 = vmatpush1.bf16.msra.mxu0 0
        %1218 = vmatprep.subr.bf16.mxu0 0
        %1219 = vmatpush1.bf16.msra.mxu0 0
        %1220 = vmatprep.subr.bf16.mxu0 0
        %1221 = vmatpush1.bf16.msra.mxu0 0
        %1222 = vmatprep.subr.bf16.mxu0 0
        %1223 = vmatpush1.bf16.msra.mxu0 0
        %1224 = vmatprep.subr.bf16.mxu0 0
        %1225 = vmatpush1.bf16.msra.mxu0 0
        %1226 = vmatprep.subr.bf16.mxu0 0
        %1227 = vmatpush1.bf16.msra.mxu0 0
        %1228 = vmatprep.subr.bf16.mxu0 0
        %1229 = vmatpush1.bf16.msra.mxu0 0
        %1230 = vmatprep.subr.bf16.mxu0 0
        %1231 = vmatpush1.bf16.msra.mxu0 0
        %1232 = vmatprep.subr.bf16.mxu0 0
        %1233 = vmatpush1.bf16.msra.mxu0 0
        %1234 = vmatprep.subr.bf16.mxu0 0
        %1235 = vmatpush1.bf16.msra.mxu0 0
        %1236 = vmatprep.mubr.bf16.mxu0 0
        %1237 = vmatmul.mubr.bf16.gmra.mrb[0].mxu0 %v1199
        %v1238 = vpop.f32.mrb[0].mxu0
        %v1239 = vadd.f32 0.0, %v1238
        %v1240 = vpop.f32.mrb[0].mxu0
        %v1241 = vpop.f32.mrb[0].mxu0
        %v1242 = vpop.f32.mrb[0].mxu0
        %1243 = vdwg.mxu0
        %1245 = vrot.lane.b32.xlu0 %v567, 8
        %v1246 = vpop.permute.xlu0 %1245
        %1249 = vrot.lane.b32.xlu0 %v679, 16
        %v1250 = vpop.permute.xlu0 %1249
        %1253 = vrot.lane.b32.xlu0 %v791, 24
        %v1254 = vpop.permute.xlu0 %1253
        %1257 = vrot.lane.b32.xlu0 %v903, 32
        %v1258 = vpop.permute.xlu0 %1257
        %1261 = vrot.lane.b32.xlu0 %v1015, 40
        %v1262 = vpop.permute.xlu0 %1261
        %1265 = vrot.lane.b32.xlu0 %v1127, 48
        %v1266 = vpop.permute.xlu0 %1265
        %1269 = vrot.lane.b32.xlu0 %v1239, 56
        %v1270 = vpop.permute.xlu0 %1269
        %v1272 = vsel %vm352, %v454, %v1246
        %vm1273 = vcmask 130048
        %v1274 = vsel %vm1273, %v1272, %v1250
        %vm1275 = vcmask 195584
        %v1276 = vsel %vm1275, %v1274, %v1254
        %vm1277 = vcmask 261120
        %v1278 = vsel %vm1277, %v1276, %v1258
        %vm1279 = vcmask 326656
        %v1280 = vsel %vm1279, %v1278, %v1262
        %vm1281 = vcmask 392192
        %v1282 = vsel %vm1281, %v1280, %v1266
        %vm1283 = vcmask 457728
        %v1284 = vsel %vm1283, %v1282, %v1270
        %1285 = vst.msk [vmem:[%s231] sm:$0xff] %vm302, %v1284
        %s1286 = sand.u32 %s102, 1
        %s1287 = scalar_lea.sflag [#allocation4], %s1286
        %s1288 = sand.u32 %s102, 1
        %s1289 = smul.addr %s1288, 8
        %s1290 = scalar_lea.vmem [#allocation7], %s1289
        %s1291 = sand.u32 %s128, 1
        %s1292 = scalar_lea.sflag [#allocation9], %s1291
        %s1293 = sand.u32 %s128, 1
        %s1294 = smul.addr %s1293, 64
        %s1295 = scalar_lea.vmem [#allocation8], %s1294
        // Predicated region
        $region41: #{tpu_custom_call.1} parent=31 // pred_check
          %p1296 = pneg %p112
        $region42: #{tpu_custom_call.1} parent=31 // pred_check_branch
          %1298 = sbr.rel (%p1296) target = $region44
        $region43: #{tpu_custom_call.1} parent=31 // pred_region
          %s1300 = ssub.s32 128, 128
          %1301 = vsyncadd %s1287, %s1300
          %s1302 = smul.addr %s26, 128
          %s1303 = scalar_lea.hbm %s3, %s1302
          %s1305 = sshll.u32 %s1290, 4
          %s1306 = int_to_ptr.vmem [resolvable:$true] %s1305
          %1308 = dma.vmem_to_hbm [thread:$0]  %s1306, 128, %s1303, %s1287
        $region44: #{tpu_custom_call.1} parent=31 // pred_fallthru
          _
        // Predicated region
        $region45: #{tpu_custom_call.1} parent=31 // pred_check
          %p1309 = pneg %p138
        $region46: #{tpu_custom_call.1} parent=31 // pred_check_branch
          %1311 = sbr.rel (%p1309) target = $region48
        $region47: #{tpu_custom_call.1} parent=31 // pred_region
          %s1313 = ssub.s32 1024, 1024
          %1314 = vsyncadd %s1292, %s1313
          %s1315 = smul.addr %s26, 8
          %s1316 = smul.addr %s1315, 128
          %s1317 = scalar_lea.hbm %s4, %s1316
          %s1318 = sshll.u32 %s1295, 4
          %s1319 = int_to_ptr.vmem [resolvable:$true] %s1318
          %1324 = dma.vmem_to_hbm [thread:$0]  %s1319, 1024, %s1317, %s1292, 128, 128, 8
        $region48: #{tpu_custom_call.1} parent=31 // pred_fallthru
          _
      $region32: #{tpu_custom_call.1} parent=5 // pred_fallthru
        _
      %p1325 = scmp.le.s32.totalorder 2, %s21
      // Predicated region
      $region49: #{tpu_custom_call.1} parent=5 // pred_check
        %p1326 = pneg %p1325
      $region50: #{tpu_custom_call.1} parent=5 // pred_check_branch
        %1328 = sbr.rel (%p1326) target = $region52
      $region51: #{tpu_custom_call.1} parent=5 // pred_region
        %s1329 = ssub.s32 %s21, 2
        // Predicated region
        $region53: #{tpu_custom_call.1} parent=51 // pred_check
          %p1330 = pneg %p118
        $region54: #{tpu_custom_call.1} parent=51 // pred_check_branch
          %1332 = sbr.rel (%p1330) target = $region56
        $region55: #{tpu_custom_call.1} parent=51 // pred_region
          %s1333 = sand.u32 %s103, 1
          %s1334 = scalar_lea.sflag [#allocation4], %s1333
          %s1335 = sand.u32 %s103, 1
          %s1336 = smul.addr %s1335, 8
          %s1337 = scalar_lea.vmem [#allocation7], %s1336
          %1338 = dma.done %s1334, 128
        $region56: #{tpu_custom_call.1} parent=51 // pred_fallthru
          _
        // Predicated region
        $region57: #{tpu_custom_call.1} parent=51 // pred_check
          %p1339 = pneg %p144
        $region58: #{tpu_custom_call.1} parent=51 // pred_check_branch
          %1341 = sbr.rel (%p1339) target = $region60
        $region59: #{tpu_custom_call.1} parent=51 // pred_region
          %s1342 = sand.u32 %s129, 1
          %s1343 = scalar_lea.sflag [#allocation9], %s1342
          %s1344 = sand.u32 %s129, 1
          %s1345 = smul.addr %s1344, 64
          %s1346 = scalar_lea.vmem [#allocation8], %s1345
          %1347 = dma.done %s1343, 1024
        $region60: #{tpu_custom_call.1} parent=51 // pred_fallthru
          _
      $region52: #{tpu_custom_call.1} parent=5 // pred_fallthru
        _
    $region6: #{tpu_custom_call.1} parent=1 // loop_footer
      %s25 = sadd.s32 1, %s21
    $region7: #{tpu_custom_call.1} parent=1 // loop_footer_branch
      %20 = sbr.rel target = $region3
    $region8: #{tpu_custom_call.1} parent=1 // loop_exit
      _
    %1348 = vsyncpa [#allocation3], 1
    %s1349 = scalar_lea.sflag [#allocation3], 1
    %1350 = vsyncpa %s1349, 1
    %1351 = vsyncpa [#allocation6], 1
    %1352 = vsyncpa [#allocation4], 1
    %s1353 = scalar_lea.sflag [#allocation4], 1
    %1354 = vsyncpa %s1353, 1
    %1355 = vsyncpa [#allocation9], 1
    %s1356 = scalar_lea.sflag [#allocation9], 1
    %1357 = vsyncpa %s1356, 1

</llo_original>
